<compile_context>
chip_gen: v7x
topology: tpu7x:2x2x1
jax: 0.10.0
libtpu: 0.0.40
codegen_flags: <defaults>
</compile_context>

<pallas_src>
import jax
import jax.numpy as jnp
from jax import lax
from jax.experimental import pallas as pl
from jax.experimental.pallas import tpu as pltpu

H1 = 183
H2 = 82
BN_EPS = 1e-5


def _round_up(x, m):
    return (x + m - 1) // m * m


# ----------------------------------------------------------------------------
# Kernel (single VMEM-resident block; training-mode BN couples the batch)
# ----------------------------------------------------------------------------
def deepsf_kernel(xb_ref, gb_ref, w1_ref, w23_ref, vec_ref, out_ref):
    h1p = w1_ref.shape[1]                 # 256
    h2p = w23_ref.shape[0] - h1p          # 128
    nop = out_ref.shape[1]                # padded n_outputs (multiple of 128)
    mxu_dtype = w1_ref.dtype              # bf16 default, f32 for bit-faithful path

    # Static, 128-aligned lane slices into the packed parameter row.
    off = 0
    g1 = vec_ref[:, off:off + h1p]; off += h1p
    be1 = vec_ref[:, off:off + h1p]; off += h1p
    g2 = vec_ref[:, off:off + h2p]; off += h2p
    be2 = vec_ref[:, off:off + h2p]; off += h2p
    b3 = vec_ref[:, off:off + nop]; off += nop
    wgn = vec_ref[:, off:off + nop]

    # Static, tile-aligned sublane slices into the merged w2||w3 weight slab.
    w2 = w23_ref[0:h1p, 0:h2p]
    w3 = w23_ref[h1p:h1p + h2p, 0:nop]

    def bn_relu(h, gamma, beta):
        # Training-mode BatchNorm1d (biased variance) fused into one affine.
        # Padded lanes: gamma = beta = 0 and h == 0 there, so they stay 0.
        mean = jnp.mean(h, axis=0, keepdims=True)        # (1, H) XLU reduce
        msq = jnp.mean(h * h, axis=0, keepdims=True)     # (1, H)
        var = jnp.maximum(msq - mean * mean, 0.0)        # clamp cancellation
        s = gamma * lax.rsqrt(var + BN_EPS)              # EUP rsqrt (free slot)
        t = beta - mean * s
        return jnp.maximum(h * s + t, 0.0)               # mul + add + max

    # layer 1: linear (bias dropped: no-op before train-mode BN) -> bn1 -> relu
    h = jnp.dot(xb_ref[...].astype(mxu_dtype), w1_ref[...],
                preferred_element_type=jnp.float32)
    h = bn_relu(h, g1, be1)

    # layer 2: linear (bias dropped) -> bn2 -> relu
    h = jnp.dot(h.astype(mxu_dtype), w2, preferred_element_type=jnp.float32)
    h = bn_relu(h, g2, be2)

    # layer 3: linear + b3 + weights_gn * gb, then relu
    o = jnp.dot(h.astype(mxu_dtype), w3, preferred_element_type=jnp.float32) + b3
    o = o + wgn * gb_ref[...]
    out_ref[...] = jnp.maximum(o, 0.0)


# ----------------------------------------------------------------------------
# Host-side parameter packing (done once)
# ----------------------------------------------------------------------------
def pack_params(raw, mxu_dtype=jnp.bfloat16):
    """Zero-pad to lane-dense (multiple-of-128) shapes, merge w2||w3 into one
    slab, and pack the per-feature vectors into a single (1, Htot) row.
    Weights are stored pre-transposed as (in_features, out_features)."""
    n_in = raw["w1"].shape[0]
    n_out = raw["w3"].shape[1]
    nip = _round_up(n_in, 128)
    h1p = _round_up(H1, 128)          # 256
    h2p = _round_up(H2, 128)          # 128
    nop = _round_up(n_out, 128)
    nc = max(h2p, nop)                # common column width for the w2||w3 slab

    def pad2(w, rows, cols):
        return jnp.pad(w, ((0, rows - w.shape[0]), (0, cols - w.shape[1])))

    def pad1(v, n):
        return jnp.pad(v, (0, n - v.shape[0]))

    w1 = pad2(raw["w1"], nip, h1p).astype(mxu_dtype)
    w23 = jnp.concatenate(
        [pad2(raw["w2"], h1p, nc), pad2(raw["w3"], h2p, nc)], axis=0
    ).astype(mxu_dtype)
    # Note: b1/b2 intentionally omitted (no-op before training-mode BN).
    vec = jnp.concatenate([
        pad1(raw["g1"], h1p), pad1(raw["be1"], h1p),
        pad1(raw["g2"], h2p), pad1(raw["be2"], h2p),
        pad1(raw["b3"], nop), pad1(raw["wgn"], nop),
    ]).reshape(1, -1).astype(jnp.float32)
    return {"w1": w1, "w23": w23, "vec": vec,
            "n_inputs": n_in, "n_outputs": n_out,
            "nip": nip, "h1p": h1p, "h2p": h2p, "nop": nop}


# ----------------------------------------------------------------------------
# Wrappers
# ----------------------------------------------------------------------------
def deepsf_forward_padded(xb_p, gb_p, packed):
    """Hot path: xb_p is (B, nip), gb_p is (B, nop), output is (B, nop) — all
    lane-dense; no wrapper-side pad/slice HBM passes."""
    B = xb_p.shape[0]
    nip, h1p, h2p, nop = packed["nip"], packed["h1p"], packed["h2p"], packed["nop"]
    assert xb_p.shape == (B, nip) and gb_p.shape == (B, nop)

    w_itemsize = jnp.dtype(packed["w1"].dtype).itemsize
    weight_bytes = w_itemsize * (packed["w1"].size + packed["w23"].size) \
        + 4 * packed["vec"].size

    # Generation-aware resident-batch footprint guard.  Training-mode BN
    # couples the whole batch; for much larger B switch to a batch-tiled grid
    # with a two-pass BN (accumulate sum/sumsq over tiles, then normalize).
    est_bytes = 4 * B * (nip + h1p + h2p + 2 * nop) + weight_bytes
    try:
        vmem_cap = int(pltpu.get_tpu_info().vmem_capacity_bytes)
    except Exception:
        vmem_cap = 128 * 1024 * 1024
    budget = min(vmem_cap // 3, 32 * 1024 * 1024)
    assert est_bytes < budget, "batch too large for resident-batch BN block"

    flops = 2 * B * (nip * h1p + h1p * h2p + h2p * nop) \
        + 12 * B * (h1p + h2p + nop)
    bytes_accessed = 4 * B * (nip + 2 * nop) + weight_bytes
    cost = pl.CostEstimate(flops=int(flops),
                           transcendentals=int(h1p + h2p),
                           bytes_accessed=int(bytes_accessed))

    vmem = pl.BlockSpec(memory_space=pltpu.MemorySpace.VMEM)
    return pl.pallas_call(
        deepsf_kernel,
        out_shape=jax.ShapeDtypeStruct((B, nop), jnp.float32),
        in_specs=[vmem] * 5,
        out_specs=vmem,
        compiler_params=pltpu.CompilerParams(vmem_limit_bytes=int(budget)),
        cost_estimate=cost,
    )(xb_p, gb_p, packed["w1"], packed["w23"], packed["vec"])


def deepsf_forward(xb, gb, packed):
    """Convenience wrapper for un-padded (B, n_inputs)/(B, n_outputs) arrays."""
    nip, nop, n_out = packed["nip"], packed["nop"], packed["n_outputs"]
    xb_p = xb if xb.shape[1] == nip else jnp.pad(xb, ((0, 0), (0, nip - xb.shape[1])))
    gb_p = gb if gb.shape[1] == nop else jnp.pad(gb, ((0, 0), (0, nop - gb.shape[1])))
    out_p = deepsf_forward_padded(xb_p, gb_p, packed)
    return out_p[:, :n_out]


# ----------------------------------------------------------------------------
# Synthetic params + pure-JAX reference (faithful to the PyTorch module)
# ----------------------------------------------------------------------------
def init_raw_params(key, n_inputs, n_outputs):
    ks = jax.random.split(key, 7)

    def lin(kw, kb, fan_in, fan_out):
        bound = 1.0 / (float(fan_in) ** 0.5)
        w = jax.random.uniform(kw, (fan_in, fan_out), jnp.float32, -bound, bound)
        b = jax.random.uniform(kb, (fan_out,), jnp.float32, -bound, bound)
        return w, b

    w1, b1 = lin(ks[0], ks[1], n_inputs, H1)
    w2, b2 = lin(ks[2], ks[3], H1, H2)
    w3, b3 = lin(ks[4], ks[5], H2, n_outputs)
    wgn = jax.random.normal(ks[6], (n_outputs,), jnp.float32)  # torch.randn(n_outputs)
    return {
        "w1": w1, "b1": b1,
        "g1": jnp.ones((H1,), jnp.float32), "be1": jnp.zeros((H1,), jnp.float32),
        "w2": w2, "b2": b2,
        "g2": jnp.ones((H2,), jnp.float32), "be2": jnp.zeros((H2,), jnp.float32),
        "w3": w3, "b3": b3, "wgn": wgn,
    }


def deepsf_reference(xb, gb, p, mxu_dtype=jnp.float32):
    """Pure-JAX reference of the PyTorch forward (training-mode batchnorm,
    biases included, two-pass variance)."""
    def mm(x, w):
        return jnp.dot(x.astype(mxu_dtype), w.astype(mxu_dtype),
                       preferred_element_type=jnp.float32)

    def bn(h, g, b):
        m = h.mean(0, keepdims=True)
        v = ((h - m) ** 2).mean(0, keepdims=True)
        return (h - m) * lax.rsqrt(v + BN_EPS) * g + b

    h = jnp.maximum(bn(mm(xb, p["w1"]) + p["b1"], p["g1"], p["be1"]), 0.0)
    h = jnp.maximum(bn(mm(h, p["w2"]) + p["b2"], p["g2"], p["be2"]), 0.0)
    o = mm(h, p["w3"]) + p["b3"] + p["wgn"] * gb
    return jnp.maximum(o, 0.0)


# ----------------------------------------------------------------------------
if __name__ == "__main__":
    n_inputs = 32
    n_outputs = 8
    B = 256  # fill the MXU M-dimension; whole batch stays VMEM-resident

    key = jax.random.PRNGKey(0)
    k_x, k_g, k_p = jax.random.split(key, 3)
    xb = jax.random.normal(k_x, (B, n_inputs), jnp.float32)
    gb = jax.random.normal(k_g, (B, n_outputs), jnp.float32)
    raw = init_raw_params(k_p, n_inputs, n_outputs)

    # 1) Default bf16 MXU-operand path (BN / elementwise stay f32).
    packed_bf16 = pack_params(raw)  # mxu_dtype defaults to bf16
    out_bf = deepsf_forward(xb, gb, packed_bf16)
    jax.block_until_ready(out_bf)
    assert out_bf.shape == (B, n_outputs)
    ref_bf = deepsf_reference(xb, gb, raw, mxu_dtype=jnp.bfloat16)
    assert jnp.allclose(out_bf, ref_bf, atol=1e-2, rtol=1e-2), "bf16 mismatch vs reference"
    assert bool(jnp.all(jnp.isfinite(out_bf))), "non-finite output (bf16 path)"

    # 2) Bit-faithful f32 MXU path (tolerance-equal to the PyTorch module;
    #    dropping the pre-BN biases and the fused-affine BN only perturb fp
    #    rounding, not the math).
    packed_f32 = pack_params(raw, mxu_dtype=jnp.float32)
    out_f32 = deepsf_forward(xb, gb, packed_f32)
    jax.block_until_ready(out_f32)
    ref_f32 = deepsf_reference(xb, gb, raw, mxu_dtype=jnp.float32)
    assert jnp.allclose(out_f32, ref_f32, atol=5e-4, rtol=5e-4), "f32 mismatch vs reference"

    print("KERNEL_OK")
</pallas_src>

<mosaic_0001>
module attributes {stable_mosaic.version = 11 : i64} {
  func.func @deepsf_kernel(%arg0: memref<256x128xf32, #tpu.memory_space<vmem>>, %arg1: memref<256x128xf32, #tpu.memory_space<vmem>>, %arg2: memref<128x256xbf16, #tpu.memory_space<vmem>>, %arg3: memref<384x128xbf16, #tpu.memory_space<vmem>>, %arg4: memref<1x1024xf32, #tpu.memory_space<vmem>>, %arg5: memref<256x128xf32, #tpu.memory_space<vmem>>) attributes {dimension_semantics = [], scalar_prefetch = 0 : i64, scratch_operands = 0 : i64, tpu.core_type = #tpu.core_type<tc>} {
    %c0 = arith.constant 0 : index
    %c0_0 = arith.constant 0 : index
    %0 = vector.load %arg4[%c0, %c0_0] : memref<1x1024xf32, #tpu.memory_space<vmem>>, vector<1x256xf32>
    %c0_1 = arith.constant 0 : index
    %c256 = arith.constant 256 : index
    %1 = vector.load %arg4[%c0_1, %c256] : memref<1x1024xf32, #tpu.memory_space<vmem>>, vector<1x256xf32>
    %c0_2 = arith.constant 0 : index
    %c512 = arith.constant 512 : index
    %2 = vector.load %arg4[%c0_2, %c512] : memref<1x1024xf32, #tpu.memory_space<vmem>>, vector<1x128xf32>
    %c0_3 = arith.constant 0 : index
    %c640 = arith.constant 640 : index
    %3 = vector.load %arg4[%c0_3, %c640] : memref<1x1024xf32, #tpu.memory_space<vmem>>, vector<1x128xf32>
    %c0_4 = arith.constant 0 : index
    %c768 = arith.constant 768 : index
    %4 = vector.load %arg4[%c0_4, %c768] : memref<1x1024xf32, #tpu.memory_space<vmem>>, vector<1x128xf32>
    %c0_5 = arith.constant 0 : index
    %c896 = arith.constant 896 : index
    %5 = vector.load %arg4[%c0_5, %c896] : memref<1x1024xf32, #tpu.memory_space<vmem>>, vector<1x128xf32>
    %c0_6 = arith.constant 0 : index
    %c0_7 = arith.constant 0 : index
    %6 = vector.load %arg3[%c0_6, %c0_7] : memref<384x128xbf16, #tpu.memory_space<vmem>>, vector<256x128xbf16>
    %c256_8 = arith.constant 256 : index
    %c0_9 = arith.constant 0 : index
    %7 = vector.load %arg3[%c256_8, %c0_9] : memref<384x128xbf16, #tpu.memory_space<vmem>>, vector<128x128xbf16>
    %c0_10 = arith.constant 0 : index
    %c0_11 = arith.constant 0 : index
    %8 = vector.load %arg0[%c0_10, %c0_11] : memref<256x128xf32, #tpu.memory_space<vmem>>, vector<256x128xf32>
    %9 = arith.truncf %8 : vector<256x128xf32> to vector<256x128xbf16>
    %c0_12 = arith.constant 0 : index
    %c0_13 = arith.constant 0 : index
    %10 = vector.load %arg2[%c0_12, %c0_13] : memref<128x256xbf16, #tpu.memory_space<vmem>>, vector<128x256xbf16>
    %cst = arith.constant dense<0.000000e+00> : vector<256x256xf32>
    %11 = tpu.matmul %9, %10, %cst {dimension_numbers = #tpu.dot_dimension_numbers<[1], [0], [0], [1], [0, 0, 1, 1], [], []>} : vector<256x128xbf16>, vector<128x256xbf16>, vector<256x256xf32> -> vector<256x256xf32>
    %cst_14 = arith.constant dense<0.000000e+00> : vector<256xf32>
    %12 = vector.multi_reduction <add>, %11, %cst_14 [0] : vector<256x256xf32> to vector<256xf32>
    %13 = vector.shape_cast %12 : vector<256xf32> to vector<1x256xf32>
    %cst_15 = arith.constant 2.560000e+02 : f32
    %14 = vector.broadcast %cst_15 : f32 to vector<1x256xf32>
    %15 = arith.divf %13, %14 : vector<1x256xf32>
    %16 = arith.mulf %11, %11 : vector<256x256xf32>
    %cst_16 = arith.constant dense<0.000000e+00> : vector<256xf32>
    %17 = vector.multi_reduction <add>, %16, %cst_16 [0] : vector<256x256xf32> to vector<256xf32>
    %18 = vector.shape_cast %17 : vector<256xf32> to vector<1x256xf32>
    %cst_17 = arith.constant 2.560000e+02 : f32
    %19 = vector.broadcast %cst_17 : f32 to vector<1x256xf32>
    %20 = arith.divf %18, %19 : vector<1x256xf32>
    %21 = arith.mulf %15, %15 : vector<1x256xf32>
    %22 = arith.subf %20, %21 : vector<1x256xf32>
    %cst_18 = arith.constant 0.000000e+00 : f32
    %23 = vector.broadcast %cst_18 : f32 to vector<1x256xf32>
    %24 = arith.maximumf %22, %23 : vector<1x256xf32>
    %cst_19 = arith.constant 9.99999974E-6 : f32
    %25 = vector.broadcast %cst_19 : f32 to vector<1x256xf32>
    %26 = arith.addf %24, %25 : vector<1x256xf32>
    %27 = math.rsqrt %26 : vector<1x256xf32>
    %28 = arith.mulf %0, %27 : vector<1x256xf32>
    %29 = arith.mulf %15, %28 : vector<1x256xf32>
    %30 = arith.subf %1, %29 : vector<1x256xf32>
    %31 = vector.broadcast %28 : vector<1x256xf32> to vector<256x256xf32>
    %32 = arith.mulf %11, %31 : vector<256x256xf32>
    %33 = vector.broadcast %30 : vector<1x256xf32> to vector<256x256xf32>
    %34 = arith.addf %32, %33 : vector<256x256xf32>
    %cst_20 = arith.constant 0.000000e+00 : f32
    %35 = vector.broadcast %cst_20 : f32 to vector<256x256xf32>
    %36 = arith.maximumf %34, %35 : vector<256x256xf32>
    %37 = arith.truncf %36 : vector<256x256xf32> to vector<256x256xbf16>
    %cst_21 = arith.constant dense<0.000000e+00> : vector<256x128xf32>
    %38 = tpu.matmul %37, %6, %cst_21 {dimension_numbers = #tpu.dot_dimension_numbers<[1], [0], [0], [1], [0, 0, 1, 1], [], []>} : vector<256x256xbf16>, vector<256x128xbf16>, vector<256x128xf32> -> vector<256x128xf32>
    %cst_22 = arith.constant dense<0.000000e+00> : vector<128xf32>
    %39 = vector.multi_reduction <add>, %38, %cst_22 [0] : vector<256x128xf32> to vector<128xf32>
    %40 = vector.shape_cast %39 : vector<128xf32> to vector<1x128xf32>
    %cst_23 = arith.constant 2.560000e+02 : f32
    %41 = vector.broadcast %cst_23 : f32 to vector<1x128xf32>
    %42 = arith.divf %40, %41 : vector<1x128xf32>
    %43 = arith.mulf %38, %38 : vector<256x128xf32>
    %cst_24 = arith.constant dense<0.000000e+00> : vector<128xf32>
    %44 = vector.multi_reduction <add>, %43, %cst_24 [0] : vector<256x128xf32> to vector<128xf32>
    %45 = vector.shape_cast %44 : vector<128xf32> to vector<1x128xf32>
    %cst_25 = arith.constant 2.560000e+02 : f32
    %46 = vector.broadcast %cst_25 : f32 to vector<1x128xf32>
    %47 = arith.divf %45, %46 : vector<1x128xf32>
    %48 = arith.mulf %42, %42 : vector<1x128xf32>
    %49 = arith.subf %47, %48 : vector<1x128xf32>
    %cst_26 = arith.constant 0.000000e+00 : f32
    %50 = vector.broadcast %cst_26 : f32 to vector<1x128xf32>
    %51 = arith.maximumf %49, %50 : vector<1x128xf32>
    %cst_27 = arith.constant 9.99999974E-6 : f32
    %52 = vector.broadcast %cst_27 : f32 to vector<1x128xf32>
    %53 = arith.addf %51, %52 : vector<1x128xf32>
    %54 = math.rsqrt %53 : vector<1x128xf32>
    %55 = arith.mulf %2, %54 : vector<1x128xf32>
    %56 = arith.mulf %42, %55 : vector<1x128xf32>
    %57 = arith.subf %3, %56 : vector<1x128xf32>
    %58 = vector.broadcast %55 : vector<1x128xf32> to vector<256x128xf32>
    %59 = arith.mulf %38, %58 : vector<256x128xf32>
    %60 = vector.broadcast %57 : vector<1x128xf32> to vector<256x128xf32>
    %61 = arith.addf %59, %60 : vector<256x128xf32>
    %cst_28 = arith.constant 0.000000e+00 : f32
    %62 = vector.broadcast %cst_28 : f32 to vector<256x128xf32>
    %63 = arith.maximumf %61, %62 : vector<256x128xf32>
    %64 = arith.truncf %63 : vector<256x128xf32> to vector<256x128xbf16>
    %cst_29 = arith.constant dense<0.000000e+00> : vector<256x128xf32>
    %65 = tpu.matmul %64, %7, %cst_29 {dimension_numbers = #tpu.dot_dimension_numbers<[1], [0], [0], [1], [0, 0, 1, 1], [], []>} : vector<256x128xbf16>, vector<128x128xbf16>, vector<256x128xf32> -> vector<256x128xf32>
    %66 = vector.broadcast %4 : vector<1x128xf32> to vector<256x128xf32>
    %67 = arith.addf %65, %66 : vector<256x128xf32>
    %c0_30 = arith.constant 0 : index
    %c0_31 = arith.constant 0 : index
    %68 = vector.load %arg1[%c0_30, %c0_31] : memref<256x128xf32, #tpu.memory_space<vmem>>, vector<256x128xf32>
    %69 = vector.broadcast %5 : vector<1x128xf32> to vector<256x128xf32>
    %70 = arith.mulf %69, %68 : vector<256x128xf32>
    %71 = arith.addf %67, %70 : vector<256x128xf32>
    %cst_32 = arith.constant 0.000000e+00 : f32
    %72 = vector.broadcast %cst_32 : f32 to vector<256x128xf32>
    %73 = arith.maximumf %71, %72 : vector<256x128xf32>
    %c0_33 = arith.constant 0 : index
    %c0_34 = arith.constant 0 : index
    %74 = vector.load %arg5[%c0_33, %c0_34] : memref<256x128xf32, #tpu.memory_space<vmem>>, vector<256x128xf32>
    tpu.vector_store %arg5[%c0_33, %c0_34], %73 {strides = array<i32>} : memref<256x128xf32, #tpu.memory_space<vmem>>, vector<256x128xf32>,
    return
  }
}

</mosaic_0001>

<llo_original>
// kernel: tpu_custom_call.1
$region0: #{tpu_custom_call.1}
  #allocation0 [shape = 'u32[]', space=smem, size = 0x4, offset = 0x4, fixed_abs, tag = 'smem constant byte address 0x4 - core index']
  #allocation1 [shape = 'u32[144,128]{1,0:T(1,128)}', space=vmem, size = 0x12000, scoped, tag = 'internal scratch']
  %s0 = inlined_call_operand.hbm [shape: f32[256,128], index: 0, kind: input, shape index: {}]
  %s1 = inlined_call_operand.hbm [shape: f32[256,128], index: 1, kind: input, shape index: {}]
  %s2 = inlined_call_operand.hbm [shape: bf16[128,256], index: 2, kind: input, shape index: {}]
  %s3 = inlined_call_operand.hbm [shape: bf16[384,128], index: 3, kind: input, shape index: {}]
  %s4 = inlined_call_operand.vmem [shape: f32[1,1024], index: 4, kind: input, shape index: {}]
  %s5 = inlined_call_operand.hbm [shape: f32[256,128], index: 5, kind: output, shape index: {}]
  %s6 = sld [smem:[#allocation0]]
  $region46: #{tpu_custom_call.1} parent=0
    _
  %s8 = ssub.s32 1, %s6
  %s9 = scalar_select 0, %s8, %s6
  $region1: #{tpu_custom_call.1} parent=0
    #allocation2 [shape = 'u8[131072]{0}', space=vmem, size = 0x20000, scoped, tag = 'input window, operand 0, single buffered']
    #allocation3 [shape = 's32[1]{0}', space=sflag, size = 0x4, scoped, tag = 'scoped memory for tpu_custom_call.1']
    #allocation4 [shape = 's32[1]{0}', space=sflag, size = 0x4, scoped, tag = 'scoped memory for tpu_custom_call.1']
    #allocation5 [shape = 'u8[131072]{0}', space=vmem, size = 0x20000, scoped, tag = 'input window, operand 1, single buffered']
    #allocation6 [shape = 's32[1]{0}', space=sflag, size = 0x4, scoped, tag = 'scoped memory for tpu_custom_call.1']
    #allocation7 [shape = 'u8[65536]{0}', space=vmem, size = 0x10000, scoped, tag = 'input window, operand 2, single buffered']
    #allocation8 [shape = 'u8[98304]{0}', space=vmem, size = 0x18000, scoped, tag = 'input window, operand 3, single buffered']
    #allocation9 [shape = 's32[1]{0}', space=sflag, size = 0x4, scoped, tag = 'scoped memory for tpu_custom_call.1']
    #allocation10 [shape = 'u8[131072]{0}', space=vmem, size = 0x20000, scoped, tag = 'output window, operand 0, single buffered']
    %10 = vsyncpa [#allocation3], 0
    %11 = vsyncpa [#allocation6], 0
    %12 = vsyncpa [#allocation9], 0
    %13 = vsyncpa [#allocation4], 0
    // Predicated region
    $region2: #{tpu_custom_call.1} parent=1 // pred_check
      _
    $region3: #{tpu_custom_call.1} parent=1 // pred_check_branch
      %15 = sbr.rel (0) target = $region5
    $region4: #{tpu_custom_call.1} parent=1 // pred_region
      %s17 = ssub.s32 4096, 4096
      %18 = vsyncadd [#allocation3], %s17
      %s19 = sshll.u32 [#allocation2], 4
      %s20 = int_to_ptr.vmem [resolvable:$true] %s19
      %25 = dma.hbm_to_vmem [thread:$0]  %s0, 4096, %s20, [#allocation3], 128, 128, 8
    $region5: #{tpu_custom_call.1} parent=1 // pred_fallthru
      _
    // Predicated region
    $region6: #{tpu_custom_call.1} parent=1 // pred_check
      _
    $region7: #{tpu_custom_call.1} parent=1 // pred_check_branch
      %27 = sbr.rel (0) target = $region9
    $region8: #{tpu_custom_call.1} parent=1 // pred_region
      %s29 = ssub.s32 4096, 4096
      %30 = vsyncadd [#allocation6], %s29
      %s31 = sshll.u32 [#allocation5], 4
      %s32 = int_to_ptr.vmem [resolvable:$true] %s31
      %37 = dma.hbm_to_vmem [thread:$0]  %s1, 4096, %s32, [#allocation6], 128, 128, 8
    $region9: #{tpu_custom_call.1} parent=1 // pred_fallthru
      _
    // Predicated region
    $region10: #{tpu_custom_call.1} parent=1 // pred_check
      _
    $region11: #{tpu_custom_call.1} parent=1 // pred_check_branch
      %39 = sbr.rel (0) target = $region13
    $region12: #{tpu_custom_call.1} parent=1 // pred_region
      %s41 = ssub.s32 2048, 2048
      %42 = vsyncadd [#allocation6], %s41
      %s43 = sshll.u32 [#allocation7], 4
      %s44 = int_to_ptr.vmem [resolvable:$true] %s43
      %49 = dma.hbm_to_vmem [thread:$0]  %s2, 2048, %s44, [#allocation6], 128, 128, 8
    $region13: #{tpu_custom_call.1} parent=1 // pred_fallthru
      _
    // Predicated region
    $region14: #{tpu_custom_call.1} parent=1 // pred_check
      _
    $region15: #{tpu_custom_call.1} parent=1 // pred_check_branch
      %51 = sbr.rel (0) target = $region17
    $region16: #{tpu_custom_call.1} parent=1 // pred_region
      %s53 = ssub.s32 3072, 3072
      %54 = vsyncadd [#allocation9], %s53
      %s55 = sshll.u32 [#allocation8], 4
      %s56 = int_to_ptr.vmem [resolvable:$true] %s55
      %61 = dma.hbm_to_vmem [thread:$0]  %s3, 3072, %s56, [#allocation9], 64, 64, 4
    $region17: #{tpu_custom_call.1} parent=1 // pred_fallthru
      _
    // Predicated region
    $region18: #{tpu_custom_call.1} parent=1 // pred_check
      _
    $region19: #{tpu_custom_call.1} parent=1 // pred_check_branch
      %63 = sbr.rel (0) target = $region21
    $region20: #{tpu_custom_call.1} parent=1 // pred_region
      _
    $region21: #{tpu_custom_call.1} parent=1 // pred_fallthru
      _
    // Predicated region
    $region22: #{tpu_custom_call.1} parent=1 // pred_check
      _
    $region23: #{tpu_custom_call.1} parent=1 // pred_check_branch
      %65 = sbr.rel (0) target = $region25
    $region24: #{tpu_custom_call.1} parent=1 // pred_region
      %66 = dma.done [#allocation3], 4096
    $region25: #{tpu_custom_call.1} parent=1 // pred_fallthru
      _
    // Predicated region
    $region26: #{tpu_custom_call.1} parent=1 // pred_check
      _
    $region27: #{tpu_custom_call.1} parent=1 // pred_check_branch
      %68 = sbr.rel (0) target = $region29
    $region28: #{tpu_custom_call.1} parent=1 // pred_region
      %69 = dma.done [#allocation6], 4096
    $region29: #{tpu_custom_call.1} parent=1 // pred_fallthru
      _
    // Predicated region
    $region30: #{tpu_custom_call.1} parent=1 // pred_check
      _
    $region31: #{tpu_custom_call.1} parent=1 // pred_check_branch
      %71 = sbr.rel (0) target = $region33
    $region32: #{tpu_custom_call.1} parent=1 // pred_region
      %72 = dma.done [#allocation6], 2048
    $region33: #{tpu_custom_call.1} parent=1 // pred_fallthru
      _
    // Predicated region
    $region34: #{tpu_custom_call.1} parent=1 // pred_check
      _
    $region35: #{tpu_custom_call.1} parent=1 // pred_check_branch
      %74 = sbr.rel (0) target = $region37
    $region36: #{tpu_custom_call.1} parent=1 // pred_region
      %75 = dma.done [#allocation9], 3072
    $region37: #{tpu_custom_call.1} parent=1 // pred_fallthru
      _
    %v77 = vld [vmem:[%s4] sm:$0x3]
    %v78 = vld [vmem:[%s4 + $0x2] sm:$0x3]
    %v79 = vld [vmem:[%s4 + $0x4] sm:$0x1]
    %v80 = vld [vmem:[%s4 + $0x5] sm:$0x1]
    %v81 = vld [vmem:[%s4 + $0x6] sm:$0x1]
    %v82 = vld [vmem:[%s4 + $0x7] sm:$0x1]
    %v83 = vld [vmem:[#allocation8] sm:$0xf]
    %v84 = vld [vmem:[#allocation8 + $0x4] sm:$0xf]
    %v85 = vld [vmem:[#allocation8 + $0x8] sm:$0xf]
    %v86 = vld [vmem:[#allocation8 + $0xc] sm:$0xf]
    %v87 = vld [vmem:[#allocation8 + $0x10] sm:$0xf]
    %v88 = vld [vmem:[#allocation8 + $0x14] sm:$0xf]
    %v89 = vld [vmem:[#allocation8 + $0x18] sm:$0xf]
    %v90 = vld [vmem:[#allocation8 + $0x1c] sm:$0xf]
    %v91 = vld [vmem:[#allocation8 + $0x20] sm:$0xf]
    %v92 = vld [vmem:[#allocation8 + $0x24] sm:$0xf]
    %v93 = vld [vmem:[#allocation8 + $0x28] sm:$0xf]
    %v94 = vld [vmem:[#allocation8 + $0x2c] sm:$0xf]
    %v95 = vld [vmem:[#allocation8 + $0x30] sm:$0xf]
    %v96 = vld [vmem:[#allocation8 + $0x34] sm:$0xf]
    %v97 = vld [vmem:[#allocation8 + $0x38] sm:$0xf]
    %v98 = vld [vmem:[#allocation8 + $0x3c] sm:$0xf]
    %v99 = vld [vmem:[#allocation8 + $0x40] sm:$0xf]
    %v100 = vld [vmem:[#allocation8 + $0x44] sm:$0xf]
    %v101 = vld [vmem:[#allocation8 + $0x48] sm:$0xf]
    %v102 = vld [vmem:[#allocation8 + $0x4c] sm:$0xf]
    %v103 = vld [vmem:[#allocation8 + $0x50] sm:$0xf]
    %v104 = vld [vmem:[#allocation8 + $0x54] sm:$0xf]
    %v105 = vld [vmem:[#allocation8 + $0x58] sm:$0xf]
    %v106 = vld [vmem:[#allocation8 + $0x5c] sm:$0xf]
    %v107 = vld [vmem:[#allocation8 + $0x60] sm:$0xf]
    %v108 = vld [vmem:[#allocation8 + $0x64] sm:$0xf]
    %v109 = vld [vmem:[#allocation8 + $0x68] sm:$0xf]
    %v110 = vld [vmem:[#allocation8 + $0x6c] sm:$0xf]
    %v111 = vld [vmem:[#allocation8 + $0x70] sm:$0xf]
    %v112 = vld [vmem:[#allocation8 + $0x74] sm:$0xf]
    %v113 = vld [vmem:[#allocation8 + $0x78] sm:$0xf]
    %v114 = vld [vmem:[#allocation8 + $0x7c] sm:$0xf]
    %v115 = vld [vmem:[#allocation8 + $0x80] sm:$0xf]
    %v116 = vld [vmem:[#allocation8 + $0x84] sm:$0xf]
    %v117 = vld [vmem:[#allocation8 + $0x88] sm:$0xf]
    %v118 = vld [vmem:[#allocation8 + $0x8c] sm:$0xf]
    %v119 = vld [vmem:[#allocation8 + $0x90] sm:$0xf]
    %v120 = vld [vmem:[#allocation8 + $0x94] sm:$0xf]
    %v121 = vld [vmem:[#allocation8 + $0x98] sm:$0xf]
    %v122 = vld [vmem:[#allocation8 + $0x9c] sm:$0xf]
    %v123 = vld [vmem:[#allocation8 + $0xa0] sm:$0xf]
    %v124 = vld [vmem:[#allocation8 + $0xa4] sm:$0xf]
    %v125 = vld [vmem:[#allocation8 + $0xa8] sm:$0xf]
    %v126 = vld [vmem:[#allocation8 + $0xac] sm:$0xf]
    %v127 = vld [vmem:[#allocation8 + $0xb0] sm:$0xf]
    %v128 = vld [vmem:[#allocation8 + $0xb4] sm:$0xf]
    %v129 = vld [vmem:[#allocation8 + $0xb8] sm:$0xf]
    %v130 = vld [vmem:[#allocation8 + $0xbc] sm:$0xf]
    %v131 = vld [vmem:[#allocation2] sm:$0xff]
    %v132 = vld [vmem:[#allocation2 + $0x8] sm:$0xff]
    %v133 = vld [vmem:[#allocation2 + $0x10] sm:$0xff]
    %v134 = vld [vmem:[#allocation2 + $0x18] sm:$0xff]
    %v135 = vld [vmem:[#allocation2 + $0x20] sm:$0xff]
    %v136 = vld [vmem:[#allocation2 + $0x28] sm:$0xff]
    %v137 = vld [vmem:[#allocation2 + $0x30] sm:$0xff]
    %v138 = vld [vmem:[#allocation2 + $0x38] sm:$0xff]
    %v139 = vld [vmem:[#allocation2 + $0x40] sm:$0xff]
    %v140 = vld [vmem:[#allocation2 + $0x48] sm:$0xff]
    %v141 = vld [vmem:[#allocation2 + $0x50] sm:$0xff]
    %v142 = vld [vmem:[#allocation2 + $0x58] sm:$0xff]
    %v143 = vld [vmem:[#allocation2 + $0x60] sm:$0xff]
    %v144 = vld [vmem:[#allocation2 + $0x68] sm:$0xff]
    %v145 = vld [vmem:[#allocation2 + $0x70] sm:$0xff]
    %v146 = vld [vmem:[#allocation2 + $0x78] sm:$0xff]
    %v147 = vld [vmem:[#allocation2 + $0x80] sm:$0xff]
    %v148 = vld [vmem:[#allocation2 + $0x88] sm:$0xff]
    %v149 = vld [vmem:[#allocation2 + $0x90] sm:$0xff]
    %v150 = vld [vmem:[#allocation2 + $0x98] sm:$0xff]
    %v151 = vld [vmem:[#allocation2 + $0xa0] sm:$0xff]
    %v152 = vld [vmem:[#allocation2 + $0xa8] sm:$0xff]
    %v153 = vld [vmem:[#allocation2 + $0xb0] sm:$0xff]
    %v154 = vld [vmem:[#allocation2 + $0xb8] sm:$0xff]
    %v155 = vld [vmem:[#allocation2 + $0xc0] sm:$0xff]
    %v156 = vld [vmem:[#allocation2 + $0xc8] sm:$0xff]
    %v157 = vld [vmem:[#allocation2 + $0xd0] sm:$0xff]
    %v158 = vld [vmem:[#allocation2 + $0xd8] sm:$0xff]
    %v159 = vld [vmem:[#allocation2 + $0xe0] sm:$0xff]
    %v160 = vld [vmem:[#allocation2 + $0xe8] sm:$0xff]
    %v161 = vld [vmem:[#allocation2 + $0xf0] sm:$0xff]
    %v162 = vld [vmem:[#allocation2 + $0xf8] sm:$0xff]
    %v163 = vpack.c.bf16 %v132, %v131
    %v164 = vpack.c.bf16 %v134, %v133
    %v165 = vpack.c.bf16 %v136, %v135
    %v166 = vpack.c.bf16 %v138, %v137
    %v167 = vpack.c.bf16 %v140, %v139
    %v168 = vpack.c.bf16 %v142, %v141
    %v169 = vpack.c.bf16 %v144, %v143
    %v170 = vpack.c.bf16 %v146, %v145
    %v171 = vpack.c.bf16 %v148, %v147
    %v172 = vpack.c.bf16 %v150, %v149
    %v173 = vpack.c.bf16 %v152, %v151
    %v174 = vpack.c.bf16 %v154, %v153
    %v175 = vpack.c.bf16 %v156, %v155
    %v176 = vpack.c.bf16 %v158, %v157
    %v177 = vpack.c.bf16 %v160, %v159
    %v178 = vpack.c.bf16 %v162, %v161
    %v179 = vld [vmem:[#allocation7] sm:$0xff]
    %v180 = vld [vmem:[#allocation7 + $0x8] sm:$0xff]
    %v181 = vld [vmem:[#allocation7 + $0x10] sm:$0xff]
    %v182 = vld [vmem:[#allocation7 + $0x18] sm:$0xff]
    %v183 = vld [vmem:[#allocation7 + $0x20] sm:$0xff]
    %v184 = vld [vmem:[#allocation7 + $0x28] sm:$0xff]
    %v185 = vld [vmem:[#allocation7 + $0x30] sm:$0xff]
    %v186 = vld [vmem:[#allocation7 + $0x38] sm:$0xff]
    %v187 = vld [vmem:[#allocation7 + $0x40] sm:$0xff]
    %v188 = vld [vmem:[#allocation7 + $0x48] sm:$0xff]
    %v189 = vld [vmem:[#allocation7 + $0x50] sm:$0xff]
    %v190 = vld [vmem:[#allocation7 + $0x58] sm:$0xff]
    %v191 = vld [vmem:[#allocation7 + $0x60] sm:$0xff]
    %v192 = vld [vmem:[#allocation7 + $0x68] sm:$0xff]
    %v193 = vld [vmem:[#allocation7 + $0x70] sm:$0xff]
    %v194 = vld [vmem:[#allocation7 + $0x78] sm:$0xff]
    %v211 = vunpack.c.l.b16 %v179
    %v212 = vunpack.c.h.b16 %v179
    %v213 = vunpack.c.l.b16 %v180
    %v214 = vunpack.c.h.b16 %v180
    %v215 = vunpack.c.l.b16 %v181
    %v216 = vunpack.c.h.b16 %v181
    %v217 = vunpack.c.l.b16 %v182
    %v218 = vunpack.c.h.b16 %v182
    %v219 = vunpack.c.l.b16 %v183
    %v220 = vunpack.c.h.b16 %v183
    %v221 = vunpack.c.l.b16 %v184
    %v222 = vunpack.c.h.b16 %v184
    %v223 = vunpack.c.l.b16 %v185
    %v224 = vunpack.c.h.b16 %v185
    %v225 = vunpack.c.l.b16 %v186
    %v226 = vunpack.c.h.b16 %v186
    %v227 = vunpack.c.l.b16 %v187
    %v228 = vunpack.c.h.b16 %v187
    %v229 = vunpack.c.l.b16 %v188
    %v230 = vunpack.c.h.b16 %v188
    %v231 = vunpack.c.l.b16 %v189
    %v232 = vunpack.c.h.b16 %v189
    %v233 = vunpack.c.l.b16 %v190
    %v234 = vunpack.c.h.b16 %v190
    %v235 = vunpack.c.l.b16 %v191
    %v236 = vunpack.c.h.b16 %v191
    %v237 = vunpack.c.l.b16 %v192
    %v238 = vunpack.c.h.b16 %v192
    %v239 = vunpack.c.l.b16 %v193
    %v240 = vunpack.c.h.b16 %v193
    %v241 = vunpack.c.l.b16 %v194
    %v242 = vunpack.c.h.b16 %v194
    %v243 = vpack.c.b16 %v213, %v211
    %v244 = vpack.c.b16 %v214, %v212
    %v245 = vpack.c.b16 %v217, %v215
    %v246 = vpack.c.b16 %v218, %v216
    %v247 = vpack.c.b16 %v221, %v219
    %v248 = vpack.c.b16 %v222, %v220
    %v249 = vpack.c.b16 %v225, %v223
    %v250 = vpack.c.b16 %v226, %v224
    %v251 = vpack.c.b16 %v229, %v227
    %v252 = vpack.c.b16 %v230, %v228
    %v253 = vpack.c.b16 %v233, %v231
    %v254 = vpack.c.b16 %v234, %v232
    %v255 = vpack.c.b16 %v237, %v235
    %v256 = vpack.c.b16 %v238, %v236
    %v257 = vpack.c.b16 %v241, %v239
    %v258 = vpack.c.b16 %v242, %v240
    %275 = vmatprep.subr.bf16.mxu0 %v244
    %276 = vmatpush1.bf16.msra.mxu0 %v243
    %277 = vmatprep.subr.bf16.mxu0 %v246
    %278 = vmatpush1.bf16.msra.mxu0 %v245
    %279 = vmatprep.subr.bf16.mxu0 %v248
    %280 = vmatpush1.bf16.msra.mxu0 %v247
    %281 = vmatprep.subr.bf16.mxu0 %v250
    %282 = vmatpush1.bf16.msra.mxu0 %v249
    %283 = vmatprep.subr.bf16.mxu0 %v252
    %284 = vmatpush1.bf16.msra.mxu0 %v251
    %285 = vmatprep.subr.bf16.mxu0 %v254
    %286 = vmatpush1.bf16.msra.mxu0 %v253
    %287 = vmatprep.subr.bf16.mxu0 %v256
    %288 = vmatpush1.bf16.msra.mxu0 %v255
    %289 = vmatprep.subr.bf16.mxu0 %v258
    %290 = vmatpush1.bf16.msra.mxu0 %v257
    %291 = vmatprep.subr.bf16.mxu0 0
    %292 = vmatpush1.bf16.msra.mxu0 0
    %293 = vmatprep.subr.bf16.mxu0 0
    %294 = vmatpush1.bf16.msra.mxu0 0
    %295 = vmatprep.subr.bf16.mxu0 0
    %296 = vmatpush1.bf16.msra.mxu0 0
    %297 = vmatprep.subr.bf16.mxu0 0
    %298 = vmatpush1.bf16.msra.mxu0 0
    %299 = vmatprep.subr.bf16.mxu0 0
    %300 = vmatpush1.bf16.msra.mxu0 0
    %301 = vmatprep.subr.bf16.mxu0 0
    %302 = vmatpush1.bf16.msra.mxu0 0
    %303 = vmatprep.subr.bf16.mxu0 0
    %304 = vmatpush1.bf16.msra.mxu0 0
    %305 = vmatprep.subr.bf16.mxu0 0
    %306 = vmatpush1.bf16.msra.mxu0 0
    %307 = vmatprep.mubr.bf16.mxu0 0
    %308 = vmatmul.mubr.bf16.gmra.mrb[0].mxu0 %v163
    %v309 = vpop.f32.mrb[0].mxu0
    %v310 = vadd.f32 0.0, %v309
    %v311 = vpop.f32.mrb[0].mxu0
    %v312 = vadd.f32 0.0, %v311
    %v313 = vpop.f32.mrb[0].mxu0
    %v314 = vadd.f32 0.0, %v313
    %v315 = vpop.f32.mrb[0].mxu0
    %v316 = vadd.f32 0.0, %v315
    %317 = vmatprep.mubr.bf16.mxu0 0
    %318 = vmatmul.mubr.bf16.gmra.mrb[0].mxu0 %v164
    %v319 = vpop.f32.mrb[0].mxu0
    %v320 = vadd.f32 0.0, %v319
    %v321 = vpop.f32.mrb[0].mxu0
    %v322 = vadd.f32 0.0, %v321
    %v323 = vpop.f32.mrb[0].mxu0
    %v324 = vadd.f32 0.0, %v323
    %v325 = vpop.f32.mrb[0].mxu0
    %v326 = vadd.f32 0.0, %v325
    %327 = vmatprep.mubr.bf16.mxu0 0
    %328 = vmatmul.mubr.bf16.gmra.mrb[0].mxu0 %v165
    %v329 = vpop.f32.mrb[0].mxu0
    %v330 = vadd.f32 0.0, %v329
    %v331 = vpop.f32.mrb[0].mxu0
    %v332 = vadd.f32 0.0, %v331
    %v333 = vpop.f32.mrb[0].mxu0
    %v334 = vadd.f32 0.0, %v333
    %v335 = vpop.f32.mrb[0].mxu0
    %v336 = vadd.f32 0.0, %v335
    %337 = vmatprep.mubr.bf16.mxu0 0
    %338 = vmatmul.mubr.bf16.gmra.mrb[0].mxu0 %v166
    %v339 = vpop.f32.mrb[0].mxu0
    %v340 = vadd.f32 0.0, %v339
    %v341 = vpop.f32.mrb[0].mxu0
    %v342 = vadd.f32 0.0, %v341
    %v343 = vpop.f32.mrb[0].mxu0
    %v344 = vadd.f32 0.0, %v343
    %v345 = vpop.f32.mrb[0].mxu0
    %v346 = vadd.f32 0.0, %v345
    %347 = vmatprep.mubr.bf16.mxu0 0
    %348 = vmatmul.mubr.bf16.gmra.mrb[0].mxu0 %v167
    %v349 = vpop.f32.mrb[0].mxu0
    %v350 = vadd.f32 0.0, %v349
    %v351 = vpop.f32.mrb[0].mxu0
    %v352 = vadd.f32 0.0, %v351
    %v353 = vpop.f32.mrb[0].mxu0
    %v354 = vadd.f32 0.0, %v353
    %v355 = vpop.f32.mrb[0].mxu0
    %v356 = vadd.f32 0.0, %v355
    %357 = vmatprep.mubr.bf16.mxu0 0
    %358 = vmatmul.mubr.bf16.gmra.mrb[0].mxu0 %v168
    %v359 = vpop.f32.mrb[0].mxu0
    %v360 = vadd.f32 0.0, %v359
    %v361 = vpop.f32.mrb[0].mxu0
    %v362 = vadd.f32 0.0, %v361
    %v363 = vpop.f32.mrb[0].mxu0
    %v364 = vadd.f32 0.0, %v363
    %v365 = vpop.f32.mrb[0].mxu0
    %v366 = vadd.f32 0.0, %v365
    %367 = vmatprep.mubr.bf16.mxu0 0
    %368 = vmatmul.mubr.bf16.gmra.mrb[0].mxu0 %v169
    %v369 = vpop.f32.mrb[0].mxu0
    %v370 = vadd.f32 0.0, %v369
    %v371 = vpop.f32.mrb[0].mxu0
    %v372 = vadd.f32 0.0, %v371
    %v373 = vpop.f32.mrb[0].mxu0
    %v374 = vadd.f32 0.0, %v373
    %v375 = vpop.f32.mrb[0].mxu0
    %v376 = vadd.f32 0.0, %v375
    %377 = vmatprep.mubr.bf16.mxu0 0
    %378 = vmatmul.mubr.bf16.gmra.mrb[0].mxu0 %v170
    %v379 = vpop.f32.mrb[0].mxu0
    %v380 = vadd.f32 0.0, %v379
    %v381 = vpop.f32.mrb[0].mxu0
    %v382 = vadd.f32 0.0, %v381
    %v383 = vpop.f32.mrb[0].mxu0
    %v384 = vadd.f32 0.0, %v383
    %v385 = vpop.f32.mrb[0].mxu0
    %v386 = vadd.f32 0.0, %v385
    %387 = vmatprep.mubr.bf16.mxu0 0
    %388 = vmatmul.mubr.bf16.gmra.mrb[0].mxu0 %v171
    %v389 = vpop.f32.mrb[0].mxu0
    %v390 = vadd.f32 0.0, %v389
    %v391 = vpop.f32.mrb[0].mxu0
    %v392 = vadd.f32 0.0, %v391
    %v393 = vpop.f32.mrb[0].mxu0
    %v394 = vadd.f32 0.0, %v393
    %v395 = vpop.f32.mrb[0].mxu0
    %v396 = vadd.f32 0.0, %v395
    %397 = vmatprep.mubr.bf16.mxu0 0
    %398 = vmatmul.mubr.bf16.gmra.mrb[0].mxu0 %v172
    %v399 = vpop.f32.mrb[0].mxu0
    %v400 = vadd.f32 0.0, %v399
    %v401 = vpop.f32.mrb[0].mxu0
    %v402 = vadd.f32 0.0, %v401
    %v403 = vpop.f32.mrb[0].mxu0
    %v404 = vadd.f32 0.0, %v403
    %v405 = vpop.f32.mrb[0].mxu0
    %v406 = vadd.f32 0.0, %v405
    %407 = vmatprep.mubr.bf16.mxu0 0
    %408 = vmatmul.mubr.bf16.gmra.mrb[0].mxu0 %v173
    %v409 = vpop.f32.mrb[0].mxu0
    %v410 = vadd.f32 0.0, %v409
    %v411 = vpop.f32.mrb[0].mxu0
    %v412 = vadd.f32 0.0, %v411
    %v413 = vpop.f32.mrb[0].mxu0
    %v414 = vadd.f32 0.0, %v413
    %v415 = vpop.f32.mrb[0].mxu0
    %v416 = vadd.f32 0.0, %v415
    %417 = vmatprep.mubr.bf16.mxu0 0
    %418 = vmatmul.mubr.bf16.gmra.mrb[0].mxu0 %v174
    %v419 = vpop.f32.mrb[0].mxu0
    %v420 = vadd.f32 0.0, %v419
    %v421 = vpop.f32.mrb[0].mxu0
    %v422 = vadd.f32 0.0, %v421
    %v423 = vpop.f32.mrb[0].mxu0
    %v424 = vadd.f32 0.0, %v423
    %v425 = vpop.f32.mrb[0].mxu0
    %v426 = vadd.f32 0.0, %v425
    %427 = vmatprep.mubr.bf16.mxu0 0
    %428 = vmatmul.mubr.bf16.gmra.mrb[0].mxu0 %v175
    %v429 = vpop.f32.mrb[0].mxu0
    %v430 = vadd.f32 0.0, %v429
    %v431 = vpop.f32.mrb[0].mxu0
    %v432 = vadd.f32 0.0, %v431
    %v433 = vpop.f32.mrb[0].mxu0
    %v434 = vadd.f32 0.0, %v433
    %v435 = vpop.f32.mrb[0].mxu0
    %v436 = vadd.f32 0.0, %v435
    %437 = vmatprep.mubr.bf16.mxu0 0
    %438 = vmatmul.mubr.bf16.gmra.mrb[0].mxu0 %v176
    %v439 = vpop.f32.mrb[0].mxu0
    %v440 = vadd.f32 0.0, %v439
    %v441 = vpop.f32.mrb[0].mxu0
    %v442 = vadd.f32 0.0, %v441
    %v443 = vpop.f32.mrb[0].mxu0
    %v444 = vadd.f32 0.0, %v443
    %v445 = vpop.f32.mrb[0].mxu0
    %v446 = vadd.f32 0.0, %v445
    %447 = vmatprep.mubr.bf16.mxu0 0
    %448 = vmatmul.mubr.bf16.gmra.mrb[0].mxu0 %v177
    %v449 = vpop.f32.mrb[0].mxu0
    %v450 = vadd.f32 0.0, %v449
    %v451 = vpop.f32.mrb[0].mxu0
    %v452 = vadd.f32 0.0, %v451
    %v453 = vpop.f32.mrb[0].mxu0
    %v454 = vadd.f32 0.0, %v453
    %v455 = vpop.f32.mrb[0].mxu0
    %v456 = vadd.f32 0.0, %v455
    %457 = vmatprep.mubr.bf16.mxu0 0
    %458 = vmatmul.mubr.bf16.gmra.mrb[0].mxu0 %v178
    %v459 = vpop.f32.mrb[0].mxu0
    %v460 = vadd.f32 0.0, %v459
    %v461 = vpop.f32.mrb[0].mxu0
    %v462 = vadd.f32 0.0, %v461
    %v463 = vpop.f32.mrb[0].mxu0
    %v464 = vadd.f32 0.0, %v463
    %v465 = vpop.f32.mrb[0].mxu0
    %v466 = vadd.f32 0.0, %v465
    %467 = vdwg.mxu0
    %v468 = vadd.f32 %v310, %v314
    %v469 = vadd.f32 %v468, %v320
    %v470 = vadd.f32 %v469, %v324
    %v471 = vadd.f32 %v470, %v330
    %v472 = vadd.f32 %v471, %v334
    %v473 = vadd.f32 %v472, %v340
    %v474 = vadd.f32 %v473, %v344
    %v475 = vadd.f32 %v474, %v350
    %v476 = vadd.f32 %v475, %v354
    %v477 = vadd.f32 %v476, %v360
    %v478 = vadd.f32 %v477, %v364
    %v479 = vadd.f32 %v478, %v370
    %v480 = vadd.f32 %v479, %v374
    %v481 = vadd.f32 %v480, %v380
    %v482 = vadd.f32 %v481, %v384
    %v483 = vadd.f32 %v482, %v390
    %v484 = vadd.f32 %v483, %v394
    %v485 = vadd.f32 %v484, %v400
    %v486 = vadd.f32 %v485, %v404
    %v487 = vadd.f32 %v486, %v410
    %v488 = vadd.f32 %v487, %v414
    %v489 = vadd.f32 %v488, %v420
    %v490 = vadd.f32 %v489, %v424
    %v491 = vadd.f32 %v490, %v430
    %v492 = vadd.f32 %v491, %v434
    %v493 = vadd.f32 %v492, %v440
    %v494 = vadd.f32 %v493, %v444
    %v495 = vadd.f32 %v494, %v450
    %v496 = vadd.f32 %v495, %v454
    %v497 = vadd.f32 %v496, %v460
    %v498 = vadd.f32 %v497, %v464
    %v499 = vrot.slane %v498, 4
    %v500 = vadd.f32 %v498, %v499
    %v501 = vrot.slane %v500, 2
    %v502 = vadd.f32 %v500, %v501
    %v503 = vrot.slane %v502, 1
    %v504 = vadd.f32 %v502, %v503
    %v505 = vadd.f32 %v312, %v316
    %v506 = vadd.f32 %v505, %v322
    %v507 = vadd.f32 %v506, %v326
    %v508 = vadd.f32 %v507, %v332
    %v509 = vadd.f32 %v508, %v336
    %v510 = vadd.f32 %v509, %v342
    %v511 = vadd.f32 %v510, %v346
    %v512 = vadd.f32 %v511, %v352
    %v513 = vadd.f32 %v512, %v356
    %v514 = vadd.f32 %v513, %v362
    %v515 = vadd.f32 %v514, %v366
    %v516 = vadd.f32 %v515, %v372
    %v517 = vadd.f32 %v516, %v376
    %v518 = vadd.f32 %v517, %v382
    %v519 = vadd.f32 %v518, %v386
    %v520 = vadd.f32 %v519, %v392
    %v521 = vadd.f32 %v520, %v396
    %v522 = vadd.f32 %v521, %v402
    %v523 = vadd.f32 %v522, %v406
    %v524 = vadd.f32 %v523, %v412
    %v525 = vadd.f32 %v524, %v416
    %v526 = vadd.f32 %v525, %v422
    %v527 = vadd.f32 %v526, %v426
    %v528 = vadd.f32 %v527, %v432
    %v529 = vadd.f32 %v528, %v436
    %v530 = vadd.f32 %v529, %v442
    %v531 = vadd.f32 %v530, %v446
    %v532 = vadd.f32 %v531, %v452
    %v533 = vadd.f32 %v532, %v456
    %v534 = vadd.f32 %v533, %v462
    %v535 = vadd.f32 %v534, %v466
    %v536 = vrot.slane %v535, 4
    %v537 = vadd.f32 %v535, %v536
    %v538 = vrot.slane %v537, 2
    %v539 = vadd.f32 %v537, %v538
    %v540 = vrot.slane %v539, 1
    %v541 = vadd.f32 %v539, %v540
    %v542 = vrcp.pop 256.0
    %v543 = vmul.f32 %v504, %v542
    %v544 = vmul.f32 %v541, %v542
    %v545 = vmul.f32 %v310, %v310
    %v546 = vmul.f32 %v312, %v312
    %v547 = vmul.f32 %v314, %v314
    %v548 = vmul.f32 %v316, %v316
    %v549 = vmul.f32 %v320, %v320
    %v550 = vmul.f32 %v322, %v322
    %v551 = vmul.f32 %v324, %v324
    %v552 = vmul.f32 %v326, %v326
    %v553 = vmul.f32 %v330, %v330
    %v554 = vmul.f32 %v332, %v332
    %v555 = vmul.f32 %v334, %v334
    %v556 = vmul.f32 %v336, %v336
    %v557 = vmul.f32 %v340, %v340
    %v558 = vmul.f32 %v342, %v342
    %v559 = vmul.f32 %v344, %v344
    %v560 = vmul.f32 %v346, %v346
    %v561 = vmul.f32 %v350, %v350
    %v562 = vmul.f32 %v352, %v352
    %v563 = vmul.f32 %v354, %v354
    %v564 = vmul.f32 %v356, %v356
    %v565 = vmul.f32 %v360, %v360
    %v566 = vmul.f32 %v362, %v362
    %v567 = vmul.f32 %v364, %v364
    %v568 = vmul.f32 %v366, %v366
    %v569 = vmul.f32 %v370, %v370
    %v570 = vmul.f32 %v372, %v372
    %v571 = vmul.f32 %v374, %v374
    %v572 = vmul.f32 %v376, %v376
    %v573 = vmul.f32 %v380, %v380
    %v574 = vmul.f32 %v382, %v382
    %v575 = vmul.f32 %v384, %v384
    %v576 = vmul.f32 %v386, %v386
    %v577 = vmul.f32 %v390, %v390
    %v578 = vmul.f32 %v392, %v392
    %v579 = vmul.f32 %v394, %v394
    %v580 = vmul.f32 %v396, %v396
    %v581 = vmul.f32 %v400, %v400
    %v582 = vmul.f32 %v402, %v402
    %v583 = vmul.f32 %v404, %v404
    %v584 = vmul.f32 %v406, %v406
    %v585 = vmul.f32 %v410, %v410
    %v586 = vmul.f32 %v412, %v412
    %v587 = vmul.f32 %v414, %v414
    %v588 = vmul.f32 %v416, %v416
    %v589 = vmul.f32 %v420, %v420
    %v590 = vmul.f32 %v422, %v422
    %v591 = vmul.f32 %v424, %v424
    %v592 = vmul.f32 %v426, %v426
    %v593 = vmul.f32 %v430, %v430
    %v594 = vmul.f32 %v432, %v432
    %v595 = vmul.f32 %v434, %v434
    %v596 = vmul.f32 %v436, %v436
    %v597 = vmul.f32 %v440, %v440
    %v598 = vmul.f32 %v442, %v442
    %v599 = vmul.f32 %v444, %v444
    %v600 = vmul.f32 %v446, %v446
    %v601 = vmul.f32 %v450, %v450
    %v602 = vmul.f32 %v452, %v452
    %v603 = vmul.f32 %v454, %v454
    %v604 = vmul.f32 %v456, %v456
    %v605 = vmul.f32 %v460, %v460
    %v606 = vmul.f32 %v462, %v462
    %v607 = vmul.f32 %v464, %v464
    %v608 = vmul.f32 %v466, %v466
    %v609 = vadd.f32 %v545, %v547
    %v610 = vadd.f32 %v609, %v549
    %v611 = vadd.f32 %v610, %v551
    %v612 = vadd.f32 %v611, %v553
    %v613 = vadd.f32 %v612, %v555
    %v614 = vadd.f32 %v613, %v557
    %v615 = vadd.f32 %v614, %v559
    %v616 = vadd.f32 %v615, %v561
    %v617 = vadd.f32 %v616, %v563
    %v618 = vadd.f32 %v617, %v565
    %v619 = vadd.f32 %v618, %v567
    %v620 = vadd.f32 %v619, %v569
    %v621 = vadd.f32 %v620, %v571
    %v622 = vadd.f32 %v621, %v573
    %v623 = vadd.f32 %v622, %v575
    %v624 = vadd.f32 %v623, %v577
    %v625 = vadd.f32 %v624, %v579
    %v626 = vadd.f32 %v625, %v581
    %v627 = vadd.f32 %v626, %v583
    %v628 = vadd.f32 %v627, %v585
    %v629 = vadd.f32 %v628, %v587
    %v630 = vadd.f32 %v629, %v589
    %v631 = vadd.f32 %v630, %v591
    %v632 = vadd.f32 %v631, %v593
    %v633 = vadd.f32 %v632, %v595
    %v634 = vadd.f32 %v633, %v597
    %v635 = vadd.f32 %v634, %v599
    %v636 = vadd.f32 %v635, %v601
    %v637 = vadd.f32 %v636, %v603
    %v638 = vadd.f32 %v637, %v605
    %v639 = vadd.f32 %v638, %v607
    %v640 = vrot.slane %v639, 4
    %v641 = vadd.f32 %v639, %v640
    %v642 = vrot.slane %v641, 2
    %v643 = vadd.f32 %v641, %v642
    %v644 = vrot.slane %v643, 1
    %v645 = vadd.f32 %v643, %v644
    %v646 = vadd.f32 %v546, %v548
    %v647 = vadd.f32 %v646, %v550
    %v648 = vadd.f32 %v647, %v552
    %v649 = vadd.f32 %v648, %v554
    %v650 = vadd.f32 %v649, %v556
    %v651 = vadd.f32 %v650, %v558
    %v652 = vadd.f32 %v651, %v560
    %v653 = vadd.f32 %v652, %v562
    %v654 = vadd.f32 %v653, %v564
    %v655 = vadd.f32 %v654, %v566
    %v656 = vadd.f32 %v655, %v568
    %v657 = vadd.f32 %v656, %v570
    %v658 = vadd.f32 %v657, %v572
    %v659 = vadd.f32 %v658, %v574
    %v660 = vadd.f32 %v659, %v576
    %v661 = vadd.f32 %v660, %v578
    %v662 = vadd.f32 %v661, %v580
    %v663 = vadd.f32 %v662, %v582
    %v664 = vadd.f32 %v663, %v584
    %v665 = vadd.f32 %v664, %v586
    %v666 = vadd.f32 %v665, %v588
    %v667 = vadd.f32 %v666, %v590
    %v668 = vadd.f32 %v667, %v592
    %v669 = vadd.f32 %v668, %v594
    %v670 = vadd.f32 %v669, %v596
    %v671 = vadd.f32 %v670, %v598
    %v672 = vadd.f32 %v671, %v600
    %v673 = vadd.f32 %v672, %v602
    %v674 = vadd.f32 %v673, %v604
    %v675 = vadd.f32 %v674, %v606
    %v676 = vadd.f32 %v675, %v608
    %v677 = vrot.slane %v676, 4
    %v678 = vadd.f32 %v676, %v677
    %v679 = vrot.slane %v678, 2
    %v680 = vadd.f32 %v678, %v679
    %v681 = vrot.slane %v680, 1
    %v682 = vadd.f32 %v680, %v681
    %v683 = vmul.f32 %v645, %v542
    %v684 = vmul.f32 %v682, %v542
    %v685 = vmul.f32 %v543, %v543
    %v686 = vmul.f32 %v544, %v544
    %v687 = vsub.f32 %v683, %v685
    %v688 = vsub.f32 %v684, %v686
    %v689 = vmax.f32 %v687, 0.0
    %v690 = vmax.f32 %v688, 0.0
    %v691 = vadd.f32 %v689, 1e-05
    %v692 = vadd.f32 %v690, 1e-05
    %v693 = vrsqrt.pop %v691
    %v694 = vrsqrt.pop %v692
    %v697 = vcombine.low %v693, %v694
    %v699 = vunpack.c.l.s4 1966171168
    %v700 = vunpack.c.0.s8 %v699
    %v701 = vlaneseq
    %v702 = vshrl.u32 %v701, 7
    %v703 = vsub.s32 %v700, %v702
    %v704 = vrot.slane %v697, %v703
    %v706 = vunpack.c.l.s4 1966171168
    %v707 = vunpack.c.0.s8 %v706
    %v708 = vlaneseq
    %v709 = vshrl.u32 %v708, 7
    %v710 = vsub.s32 %v707, %v709
    %v711 = vrot.slane %v704, %v710
    %v713 = vmul.f32 %v77, %v711
    %v715 = vlaneseq
    %v716 = vshrl.u32 %v715, 7
    %v717 = vsub.s32 0, %v716
    %v718 = vrot.slane %v713, %v717
    %v719 = vlaneseq
    %v720 = vshrl.u32 %v719, 7
    %v721 = vsub.s32 1, %v720
    %v722 = vrot.slane %v713, %v721
    %v725 = vmul.f32 %v543, %v718
    %v726 = vmul.f32 %v544, %v722
    %v729 = vcombine.low %v725, %v726
    %v731 = vunpack.c.l.s4 1966171168
    %v732 = vunpack.c.0.s8 %v731
    %v733 = vlaneseq
    %v734 = vshrl.u32 %v733, 7
    %v735 = vsub.s32 %v732, %v734
    %v736 = vrot.slane %v729, %v735
    %v738 = vunpack.c.l.s4 1966171168
    %v739 = vunpack.c.0.s8 %v738
    %v740 = vlaneseq
    %v741 = vshrl.u32 %v740, 7
    %v742 = vsub.s32 %v739, %v741
    %v743 = vrot.slane %v736, %v742
    %v745 = vsub.f32 %v78, %v743
    %v746 = vmul.f32 %v310, %v718
    %v747 = vmul.f32 %v312, %v722
    %v748 = vmul.f32 %v314, %v718
    %v749 = vmul.f32 %v316, %v722
    %v750 = vmul.f32 %v320, %v718
    %v751 = vmul.f32 %v322, %v722
    %v752 = vmul.f32 %v324, %v718
    %v753 = vmul.f32 %v326, %v722
    %v754 = vmul.f32 %v330, %v718
    %v755 = vmul.f32 %v332, %v722
    %v756 = vmul.f32 %v334, %v718
    %v757 = vmul.f32 %v336, %v722
    %v758 = vmul.f32 %v340, %v718
    %v759 = vmul.f32 %v342, %v722
    %v760 = vmul.f32 %v344, %v718
    %v761 = vmul.f32 %v346, %v722
    %v762 = vmul.f32 %v350, %v718
    %v763 = vmul.f32 %v352, %v722
    %v764 = vmul.f32 %v354, %v718
    %v765 = vmul.f32 %v356, %v722
    %v766 = vmul.f32 %v360, %v718
    %v767 = vmul.f32 %v362, %v722
    %v768 = vmul.f32 %v364, %v718
    %v769 = vmul.f32 %v366, %v722
    %v770 = vmul.f32 %v370, %v718
    %v771 = vmul.f32 %v372, %v722
    %v772 = vmul.f32 %v374, %v718
    %v773 = vmul.f32 %v376, %v722
    %v774 = vmul.f32 %v380, %v718
    %v775 = vmul.f32 %v382, %v722
    %v776 = vmul.f32 %v384, %v718
    %v777 = vmul.f32 %v386, %v722
    %v778 = vmul.f32 %v390, %v718
    %v779 = vmul.f32 %v392, %v722
    %v780 = vmul.f32 %v394, %v718
    %v781 = vmul.f32 %v396, %v722
    %v782 = vmul.f32 %v400, %v718
    %v783 = vmul.f32 %v402, %v722
    %v784 = vmul.f32 %v404, %v718
    %v785 = vmul.f32 %v406, %v722
    %v786 = vmul.f32 %v410, %v718
    %v787 = vmul.f32 %v412, %v722
    %v788 = vmul.f32 %v414, %v718
    %v789 = vmul.f32 %v416, %v722
    %v790 = vmul.f32 %v420, %v718
    %v791 = vmul.f32 %v422, %v722
    %v792 = vmul.f32 %v424, %v718
    %v793 = vmul.f32 %v426, %v722
    %v794 = vmul.f32 %v430, %v718
    %v795 = vmul.f32 %v432, %v722
    %v796 = vmul.f32 %v434, %v718
    %v797 = vmul.f32 %v436, %v722
    %v798 = vmul.f32 %v440, %v718
    %v799 = vmul.f32 %v442, %v722
    %v800 = vmul.f32 %v444, %v718
    %v801 = vmul.f32 %v446, %v722
    %v802 = vmul.f32 %v450, %v718
    %v803 = vmul.f32 %v452, %v722
    %v804 = vmul.f32 %v454, %v718
    %v805 = vmul.f32 %v456, %v722
    %v806 = vmul.f32 %v460, %v718
    %v807 = vmul.f32 %v462, %v722
    %v808 = vmul.f32 %v464, %v718
    %v809 = vmul.f32 %v466, %v722
    %v811 = vlaneseq
    %v812 = vshrl.u32 %v811, 7
    %v813 = vsub.s32 0, %v812
    %v814 = vrot.slane %v745, %v813
    %v815 = vlaneseq
    %v816 = vshrl.u32 %v815, 7
    %v817 = vsub.s32 1, %v816
    %v818 = vrot.slane %v745, %v817
    %v821 = vadd.f32 %v746, %v814
    %v822 = vadd.f32 %v747, %v818
    %v823 = vadd.f32 %v748, %v814
    %v824 = vadd.f32 %v749, %v818
    %v825 = vadd.f32 %v750, %v814
    %v826 = vadd.f32 %v751, %v818
    %v827 = vadd.f32 %v752, %v814
    %v828 = vadd.f32 %v753, %v818
    %v829 = vadd.f32 %v754, %v814
    %v830 = vadd.f32 %v755, %v818
    %v831 = vadd.f32 %v756, %v814
    %v832 = vadd.f32 %v757, %v818
    %v833 = vadd.f32 %v758, %v814
    %v834 = vadd.f32 %v759, %v818
    %v835 = vadd.f32 %v760, %v814
    %v836 = vadd.f32 %v761, %v818
    %v837 = vadd.f32 %v762, %v814
    %v838 = vadd.f32 %v763, %v818
    %v839 = vadd.f32 %v764, %v814
    %v840 = vadd.f32 %v765, %v818
    %v841 = vadd.f32 %v766, %v814
    %v842 = vadd.f32 %v767, %v818
    %v843 = vadd.f32 %v768, %v814
    %v844 = vadd.f32 %v769, %v818
    %v845 = vadd.f32 %v770, %v814
    %v846 = vadd.f32 %v771, %v818
    %v847 = vadd.f32 %v772, %v814
    %v848 = vadd.f32 %v773, %v818
    %v849 = vadd.f32 %v774, %v814
    %v850 = vadd.f32 %v775, %v818
    %v851 = vadd.f32 %v776, %v814
    %v852 = vadd.f32 %v777, %v818
    %v853 = vadd.f32 %v778, %v814
    %v854 = vadd.f32 %v779, %v818
    %v855 = vadd.f32 %v780, %v814
    %v856 = vadd.f32 %v781, %v818
    %v857 = vadd.f32 %v782, %v814
    %v858 = vadd.f32 %v783, %v818
    %v859 = vadd.f32 %v784, %v814
    %v860 = vadd.f32 %v785, %v818
    %v861 = vadd.f32 %v786, %v814
    %v862 = vadd.f32 %v787, %v818
    %v863 = vadd.f32 %v788, %v814
    %v864 = vadd.f32 %v789, %v818
    %v865 = vadd.f32 %v790, %v814
    %v866 = vadd.f32 %v791, %v818
    %v867 = vadd.f32 %v792, %v814
    %v868 = vadd.f32 %v793, %v818
    %v869 = vadd.f32 %v794, %v814
    %v870 = vadd.f32 %v795, %v818
    %v871 = vadd.f32 %v796, %v814
    %v872 = vadd.f32 %v797, %v818
    %v873 = vadd.f32 %v798, %v814
    %v874 = vadd.f32 %v799, %v818
    %v875 = vadd.f32 %v800, %v814
    %v876 = vadd.f32 %v801, %v818
    %v877 = vadd.f32 %v802, %v814
    %v878 = vadd.f32 %v803, %v818
    %v879 = vadd.f32 %v804, %v814
    %v880 = vadd.f32 %v805, %v818
    %v881 = vadd.f32 %v806, %v814
    %v882 = vadd.f32 %v807, %v818
    %v883 = vadd.f32 %v808, %v814
    %v884 = vadd.f32 %v809, %v818
    %v885 = vmax.f32 %v821, 0.0
    %v886 = vmax.f32 %v822, 0.0
    %v887 = vmax.f32 %v823, 0.0
    %v888 = vmax.f32 %v824, 0.0
    %v889 = vmax.f32 %v825, 0.0
    %v890 = vmax.f32 %v826, 0.0
    %v891 = vmax.f32 %v827, 0.0
    %v892 = vmax.f32 %v828, 0.0
    %v893 = vmax.f32 %v829, 0.0
    %v894 = vmax.f32 %v830, 0.0
    %v895 = vmax.f32 %v831, 0.0
    %v896 = vmax.f32 %v832, 0.0
    %v897 = vmax.f32 %v833, 0.0
    %v898 = vmax.f32 %v834, 0.0
    %v899 = vmax.f32 %v835, 0.0
    %v900 = vmax.f32 %v836, 0.0
    %v901 = vmax.f32 %v837, 0.0
    %v902 = vmax.f32 %v838, 0.0
    %v903 = vmax.f32 %v839, 0.0
    %v904 = vmax.f32 %v840, 0.0
    %v905 = vmax.f32 %v841, 0.0
    %v906 = vmax.f32 %v842, 0.0
    %v907 = vmax.f32 %v843, 0.0
    %v908 = vmax.f32 %v844, 0.0
    %v909 = vmax.f32 %v845, 0.0
    %v910 = vmax.f32 %v846, 0.0
    %v911 = vmax.f32 %v847, 0.0
    %v912 = vmax.f32 %v848, 0.0
    %v913 = vmax.f32 %v849, 0.0
    %v914 = vmax.f32 %v850, 0.0
    %v915 = vmax.f32 %v851, 0.0
    %v916 = vmax.f32 %v852, 0.0
    %v917 = vmax.f32 %v853, 0.0
    %v918 = vmax.f32 %v854, 0.0
    %v919 = vmax.f32 %v855, 0.0
    %v920 = vmax.f32 %v856, 0.0
    %v921 = vmax.f32 %v857, 0.0
    %v922 = vmax.f32 %v858, 0.0
    %v923 = vmax.f32 %v859, 0.0
    %v924 = vmax.f32 %v860, 0.0
    %v925 = vmax.f32 %v861, 0.0
    %v926 = vmax.f32 %v862, 0.0
    %v927 = vmax.f32 %v863, 0.0
    %v928 = vmax.f32 %v864, 0.0
    %v929 = vmax.f32 %v865, 0.0
    %v930 = vmax.f32 %v866, 0.0
    %v931 = vmax.f32 %v867, 0.0
    %v932 = vmax.f32 %v868, 0.0
    %v933 = vmax.f32 %v869, 0.0
    %v934 = vmax.f32 %v870, 0.0
    %v935 = vmax.f32 %v871, 0.0
    %v936 = vmax.f32 %v872, 0.0
    %v937 = vmax.f32 %v873, 0.0
    %v938 = vmax.f32 %v874, 0.0
    %v939 = vmax.f32 %v875, 0.0
    %v940 = vmax.f32 %v876, 0.0
    %v941 = vmax.f32 %v877, 0.0
    %v942 = vmax.f32 %v878, 0.0
    %v943 = vmax.f32 %v879, 0.0
    %v944 = vmax.f32 %v880, 0.0
    %v945 = vmax.f32 %v881, 0.0
    %v946 = vmax.f32 %v882, 0.0
    %v947 = vmax.f32 %v883, 0.0
    %v948 = vmax.f32 %v884, 0.0
    %v949 = vpack.c.bf16 %v887, %v885
    %v950 = vpack.c.bf16 %v888, %v886
    %v951 = vpack.c.bf16 %v891, %v889
    %v952 = vpack.c.bf16 %v892, %v890
    %v953 = vpack.c.bf16 %v895, %v893
    %v954 = vpack.c.bf16 %v896, %v894
    %v955 = vpack.c.bf16 %v899, %v897
    %v956 = vpack.c.bf16 %v900, %v898
    %v957 = vpack.c.bf16 %v903, %v901
    %v958 = vpack.c.bf16 %v904, %v902
    %v959 = vpack.c.bf16 %v907, %v905
    %v960 = vpack.c.bf16 %v908, %v906
    %v961 = vpack.c.bf16 %v911, %v909
    %v962 = vpack.c.bf16 %v912, %v910
    %v963 = vpack.c.bf16 %v915, %v913
    %v964 = vpack.c.bf16 %v916, %v914
    %v965 = vpack.c.bf16 %v919, %v917
    %v966 = vpack.c.bf16 %v920, %v918
    %v967 = vpack.c.bf16 %v923, %v921
    %v968 = vpack.c.bf16 %v924, %v922
    %v969 = vpack.c.bf16 %v927, %v925
    %v970 = vpack.c.bf16 %v928, %v926
    %v971 = vpack.c.bf16 %v931, %v929
    %v972 = vpack.c.bf16 %v932, %v930
    %v973 = vpack.c.bf16 %v935, %v933
    %v974 = vpack.c.bf16 %v936, %v934
    %v975 = vpack.c.bf16 %v939, %v937
    %v976 = vpack.c.bf16 %v940, %v938
    %v977 = vpack.c.bf16 %v943, %v941
    %v978 = vpack.c.bf16 %v944, %v942
    %v979 = vpack.c.bf16 %v947, %v945
    %v980 = vpack.c.bf16 %v948, %v946
    %v1013 = vunpack.c.l.b16 %v83
    %v1014 = vunpack.c.l.b16 %v84
    %v1015 = vunpack.c.l.b16 %v85
    %v1016 = vunpack.c.l.b16 %v86
    %v1017 = vunpack.c.l.b16 %v87
    %v1018 = vunpack.c.l.b16 %v88
    %v1019 = vunpack.c.l.b16 %v89
    %v1020 = vunpack.c.l.b16 %v90
    %v1021 = vunpack.c.l.b16 %v91
    %v1022 = vunpack.c.l.b16 %v92
    %v1023 = vunpack.c.l.b16 %v93
    %v1024 = vunpack.c.l.b16 %v94
    %v1025 = vunpack.c.l.b16 %v95
    %v1026 = vunpack.c.l.b16 %v96
    %v1027 = vunpack.c.l.b16 %v97
    %v1028 = vunpack.c.l.b16 %v98
    %v1029 = vunpack.c.l.b16 %v99
    %v1030 = vunpack.c.l.b16 %v100
    %v1031 = vunpack.c.l.b16 %v101
    %v1032 = vunpack.c.l.b16 %v102
    %v1033 = vunpack.c.l.b16 %v103
    %v1034 = vunpack.c.l.b16 %v104
    %v1035 = vunpack.c.l.b16 %v105
    %v1036 = vunpack.c.l.b16 %v106
    %v1037 = vunpack.c.l.b16 %v107
    %v1038 = vunpack.c.l.b16 %v108
    %v1039 = vunpack.c.l.b16 %v109
    %v1040 = vunpack.c.l.b16 %v110
    %v1041 = vunpack.c.l.b16 %v111
    %v1042 = vunpack.c.l.b16 %v112
    %v1043 = vunpack.c.l.b16 %v113
    %v1044 = vunpack.c.l.b16 %v114
    %v1045 = vpack.c.b16 %v1014, %v1013
    %v1046 = vpack.c.b16 %v1016, %v1015
    %v1047 = vpack.c.b16 %v1018, %v1017
    %v1048 = vpack.c.b16 %v1020, %v1019
    %v1049 = vpack.c.b16 %v1022, %v1021
    %v1050 = vpack.c.b16 %v1024, %v1023
    %v1051 = vpack.c.b16 %v1026, %v1025
    %v1052 = vpack.c.b16 %v1028, %v1027
    %v1053 = vpack.c.b16 %v1030, %v1029
    %v1054 = vpack.c.b16 %v1032, %v1031
    %v1055 = vpack.c.b16 %v1034, %v1033
    %v1056 = vpack.c.b16 %v1036, %v1035
    %v1057 = vpack.c.b16 %v1038, %v1037
    %v1058 = vpack.c.b16 %v1040, %v1039
    %v1059 = vpack.c.b16 %v1042, %v1041
    %v1060 = vpack.c.b16 %v1044, %v1043
    %1077 = vmatprep.subr.bf16.mxu0 0
    %1078 = vmatpush1.bf16.msra.mxu0 %v1045
    %1079 = vmatprep.subr.bf16.mxu0 0
    %1080 = vmatpush1.bf16.msra.mxu0 %v1046
    %1081 = vmatprep.subr.bf16.mxu0 0
    %1082 = vmatpush1.bf16.msra.mxu0 %v1047
    %1083 = vmatprep.subr.bf16.mxu0 0
    %1084 = vmatpush1.bf16.msra.mxu0 %v1048
    %1085 = vmatprep.subr.bf16.mxu0 0
    %1086 = vmatpush1.bf16.msra.mxu0 %v1049
    %1087 = vmatprep.subr.bf16.mxu0 0
    %1088 = vmatpush1.bf16.msra.mxu0 %v1050
    %1089 = vmatprep.subr.bf16.mxu0 0
    %1090 = vmatpush1.bf16.msra.mxu0 %v1051
    %1091 = vmatprep.subr.bf16.mxu0 0
    %1092 = vmatpush1.bf16.msra.mxu0 %v1052
    %1093 = vmatprep.subr.bf16.mxu0 0
    %1094 = vmatpush1.bf16.msra.mxu0 %v1053
    %1095 = vmatprep.subr.bf16.mxu0 0
    %1096 = vmatpush1.bf16.msra.mxu0 %v1054
    %1097 = vmatprep.subr.bf16.mxu0 0
    %1098 = vmatpush1.bf16.msra.mxu0 %v1055
    %1099 = vmatprep.subr.bf16.mxu0 0
    %1100 = vmatpush1.bf16.msra.mxu0 %v1056
    %1101 = vmatprep.subr.bf16.mxu0 0
    %1102 = vmatpush1.bf16.msra.mxu0 %v1057
    %1103 = vmatprep.subr.bf16.mxu0 0
    %1104 = vmatpush1.bf16.msra.mxu0 %v1058
    %1105 = vmatprep.subr.bf16.mxu0 0
    %1106 = vmatpush1.bf16.msra.mxu0 %v1059
    %1107 = vmatprep.subr.bf16.mxu0 0
    %1108 = vmatpush1.bf16.msra.mxu0 %v1060
    %1109 = vmatprep.mubr.bf16.mxu0 %v950
    %1110 = vmatmul.mubr.bf16.gmra.mrb[0].mxu0 %v949
    %v1111 = vpop.f32.mrb[0].mxu0
    %v1112 = vadd.f32 0.0, %v1111
    %v1113 = vpop.f32.mrb[0].mxu0
    %v1114 = vpop.f32.mrb[0].mxu0
    %v1115 = vadd.f32 0.0, %v1114
    %v1116 = vpop.f32.mrb[0].mxu0
    %1117 = vmatprep.mubr.bf16.mxu0 %v952
    %1118 = vmatmul.mubr.bf16.gmra.mrb[0].mxu0 %v951
    %v1119 = vpop.f32.mrb[0].mxu0
    %v1120 = vadd.f32 0.0, %v1119
    %v1121 = vpop.f32.mrb[0].mxu0
    %v1122 = vpop.f32.mrb[0].mxu0
    %v1123 = vadd.f32 0.0, %v1122
    %v1124 = vpop.f32.mrb[0].mxu0
    %1125 = vmatprep.mubr.bf16.mxu0 %v954
    %1126 = vmatmul.mubr.bf16.gmra.mrb[0].mxu0 %v953
    %v1127 = vpop.f32.mrb[0].mxu0
    %v1128 = vadd.f32 0.0, %v1127
    %v1129 = vpop.f32.mrb[0].mxu0
    %v1130 = vpop.f32.mrb[0].mxu0
    %v1131 = vadd.f32 0.0, %v1130
    %v1132 = vpop.f32.mrb[0].mxu0
    %1133 = vmatprep.mubr.bf16.mxu0 %v956
    %1134 = vmatmul.mubr.bf16.gmra.mrb[0].mxu0 %v955
    %v1135 = vpop.f32.mrb[0].mxu0
    %v1136 = vadd.f32 0.0, %v1135
    %v1137 = vpop.f32.mrb[0].mxu0
    %v1138 = vpop.f32.mrb[0].mxu0
    %v1139 = vadd.f32 0.0, %v1138
    %v1140 = vpop.f32.mrb[0].mxu0
    %1141 = vmatprep.mubr.bf16.mxu0 %v958
    %1142 = vmatmul.mubr.bf16.gmra.mrb[0].mxu0 %v957
    %v1143 = vpop.f32.mrb[0].mxu0
    %v1144 = vadd.f32 0.0, %v1143
    %v1145 = vpop.f32.mrb[0].mxu0
    %v1146 = vpop.f32.mrb[0].mxu0
    %v1147 = vadd.f32 0.0, %v1146
    %v1148 = vpop.f32.mrb[0].mxu0
    %1149 = vmatprep.mubr.bf16.mxu0 %v960
    %1150 = vmatmul.mubr.bf16.gmra.mrb[0].mxu0 %v959
    %v1151 = vpop.f32.mrb[0].mxu0
    %v1152 = vadd.f32 0.0, %v1151
    %v1153 = vpop.f32.mrb[0].mxu0
    %v1154 = vpop.f32.mrb[0].mxu0
    %v1155 = vadd.f32 0.0, %v1154
    %v1156 = vpop.f32.mrb[0].mxu0
    %1157 = vmatprep.mubr.bf16.mxu0 %v962
    %1158 = vmatmul.mubr.bf16.gmra.mrb[0].mxu0 %v961
    %v1159 = vpop.f32.mrb[0].mxu0
    %v1160 = vadd.f32 0.0, %v1159
    %v1161 = vpop.f32.mrb[0].mxu0
    %v1162 = vpop.f32.mrb[0].mxu0
    %v1163 = vadd.f32 0.0, %v1162
    %v1164 = vpop.f32.mrb[0].mxu0
    %1165 = vmatprep.mubr.bf16.mxu0 %v964
    %1166 = vmatmul.mubr.bf16.gmra.mrb[0].mxu0 %v963
    %v1167 = vpop.f32.mrb[0].mxu0
    %v1168 = vadd.f32 0.0, %v1167
    %v1169 = vpop.f32.mrb[0].mxu0
    %v1170 = vpop.f32.mrb[0].mxu0
    %v1171 = vadd.f32 0.0, %v1170
    %v1172 = vpop.f32.mrb[0].mxu0
    %1173 = vmatprep.mubr.bf16.mxu0 %v966
    %1174 = vmatmul.mubr.bf16.gmra.mrb[0].mxu0 %v965
    %v1175 = vpop.f32.mrb[0].mxu0
    %v1176 = vadd.f32 0.0, %v1175
    %v1177 = vpop.f32.mrb[0].mxu0
    %v1178 = vpop.f32.mrb[0].mxu0
    %v1179 = vadd.f32 0.0, %v1178
    %v1180 = vpop.f32.mrb[0].mxu0
    %1181 = vmatprep.mubr.bf16.mxu0 %v968
    %1182 = vmatmul.mubr.bf16.gmra.mrb[0].mxu0 %v967
    %v1183 = vpop.f32.mrb[0].mxu0
    %v1184 = vadd.f32 0.0, %v1183
    %v1185 = vpop.f32.mrb[0].mxu0
    %v1186 = vpop.f32.mrb[0].mxu0
    %v1187 = vadd.f32 0.0, %v1186
    %v1188 = vpop.f32.mrb[0].mxu0
    %1189 = vmatprep.mubr.bf16.mxu0 %v970
    %1190 = vmatmul.mubr.bf16.gmra.mrb[0].mxu0 %v969
    %v1191 = vpop.f32.mrb[0].mxu0
    %v1192 = vadd.f32 0.0, %v1191
    %v1193 = vpop.f32.mrb[0].mxu0
    %v1194 = vpop.f32.mrb[0].mxu0
    %v1195 = vadd.f32 0.0, %v1194
    %v1196 = vpop.f32.mrb[0].mxu0
    %1197 = vmatprep.mubr.bf16.mxu0 %v972
    %1198 = vmatmul.mubr.bf16.gmra.mrb[0].mxu0 %v971
    %v1199 = vpop.f32.mrb[0].mxu0
    %v1200 = vadd.f32 0.0, %v1199
    %v1201 = vpop.f32.mrb[0].mxu0
    %v1202 = vpop.f32.mrb[0].mxu0
    %v1203 = vadd.f32 0.0, %v1202
    %v1204 = vpop.f32.mrb[0].mxu0
    %1205 = vmatprep.mubr.bf16.mxu0 %v974
    %1206 = vmatmul.mubr.bf16.gmra.mrb[0].mxu0 %v973
    %v1207 = vpop.f32.mrb[0].mxu0
    %v1208 = vadd.f32 0.0, %v1207
    %v1209 = vpop.f32.mrb[0].mxu0
    %v1210 = vpop.f32.mrb[0].mxu0
    %v1211 = vadd.f32 0.0, %v1210
    %v1212 = vpop.f32.mrb[0].mxu0
    %1213 = vmatprep.mubr.bf16.mxu0 %v976
    %1214 = vmatmul.mubr.bf16.gmra.mrb[0].mxu0 %v975
    %v1215 = vpop.f32.mrb[0].mxu0
    %v1216 = vadd.f32 0.0, %v1215
    %v1217 = vpop.f32.mrb[0].mxu0
    %v1218 = vpop.f32.mrb[0].mxu0
    %v1219 = vadd.f32 0.0, %v1218
    %v1220 = vpop.f32.mrb[0].mxu0
    %1221 = vmatprep.mubr.bf16.mxu0 %v978
    %1222 = vmatmul.mubr.bf16.gmra.mrb[0].mxu0 %v977
    %v1223 = vpop.f32.mrb[0].mxu0
    %v1224 = vadd.f32 0.0, %v1223
    %v1225 = vpop.f32.mrb[0].mxu0
    %v1226 = vpop.f32.mrb[0].mxu0
    %v1227 = vadd.f32 0.0, %v1226
    %v1228 = vpop.f32.mrb[0].mxu0
    %1229 = vmatprep.mubr.bf16.mxu0 %v980
    %1230 = vmatmul.mubr.bf16.gmra.mrb[0].mxu0 %v979
    %v1231 = vpop.f32.mrb[0].mxu0
    %v1232 = vadd.f32 0.0, %v1231
    %v1233 = vpop.f32.mrb[0].mxu0
    %v1234 = vpop.f32.mrb[0].mxu0
    %v1235 = vadd.f32 0.0, %v1234
    %v1236 = vpop.f32.mrb[0].mxu0
    %1237 = vdwg.mxu0
    %v1238 = vadd.f32 %v1112, %v1115
    %v1239 = vadd.f32 %v1238, %v1120
    %v1240 = vadd.f32 %v1239, %v1123
    %v1241 = vadd.f32 %v1240, %v1128
    %v1242 = vadd.f32 %v1241, %v1131
    %v1243 = vadd.f32 %v1242, %v1136
    %v1244 = vadd.f32 %v1243, %v1139
    %v1245 = vadd.f32 %v1244, %v1144
    %v1246 = vadd.f32 %v1245, %v1147
    %v1247 = vadd.f32 %v1246, %v1152
    %v1248 = vadd.f32 %v1247, %v1155
    %v1249 = vadd.f32 %v1248, %v1160
    %v1250 = vadd.f32 %v1249, %v1163
    %v1251 = vadd.f32 %v1250, %v1168
    %v1252 = vadd.f32 %v1251, %v1171
    %v1253 = vadd.f32 %v1252, %v1176
    %v1254 = vadd.f32 %v1253, %v1179
    %v1255 = vadd.f32 %v1254, %v1184
    %v1256 = vadd.f32 %v1255, %v1187
    %v1257 = vadd.f32 %v1256, %v1192
    %v1258 = vadd.f32 %v1257, %v1195
    %v1259 = vadd.f32 %v1258, %v1200
    %v1260 = vadd.f32 %v1259, %v1203
    %v1261 = vadd.f32 %v1260, %v1208
    %v1262 = vadd.f32 %v1261, %v1211
    %v1263 = vadd.f32 %v1262, %v1216
    %v1264 = vadd.f32 %v1263, %v1219
    %v1265 = vadd.f32 %v1264, %v1224
    %v1266 = vadd.f32 %v1265, %v1227
    %v1267 = vadd.f32 %v1266, %v1232
    %v1268 = vadd.f32 %v1267, %v1235
    %v1269 = vrot.slane %v1268, 4
    %v1270 = vadd.f32 %v1268, %v1269
    %v1271 = vrot.slane %v1270, 2
    %v1272 = vadd.f32 %v1270, %v1271
    %v1273 = vrot.slane %v1272, 1
    %v1274 = vadd.f32 %v1272, %v1273
    %v1275 = vmul.f32 %v1274, %v542
    %v1276 = vmul.f32 %v1112, %v1112
    %v1277 = vmul.f32 %v1115, %v1115
    %v1278 = vmul.f32 %v1120, %v1120
    %v1279 = vmul.f32 %v1123, %v1123
    %v1280 = vmul.f32 %v1128, %v1128
    %v1281 = vmul.f32 %v1131, %v1131
    %v1282 = vmul.f32 %v1136, %v1136
    %v1283 = vmul.f32 %v1139, %v1139
    %v1284 = vmul.f32 %v1144, %v1144
    %v1285 = vmul.f32 %v1147, %v1147
    %v1286 = vmul.f32 %v1152, %v1152
    %v1287 = vmul.f32 %v1155, %v1155
    %v1288 = vmul.f32 %v1160, %v1160
    %v1289 = vmul.f32 %v1163, %v1163
    %v1290 = vmul.f32 %v1168, %v1168
    %v1291 = vmul.f32 %v1171, %v1171
    %v1292 = vmul.f32 %v1176, %v1176
    %v1293 = vmul.f32 %v1179, %v1179
    %v1294 = vmul.f32 %v1184, %v1184
    %v1295 = vmul.f32 %v1187, %v1187
    %v1296 = vmul.f32 %v1192, %v1192
    %v1297 = vmul.f32 %v1195, %v1195
    %v1298 = vmul.f32 %v1200, %v1200
    %v1299 = vmul.f32 %v1203, %v1203
    %v1300 = vmul.f32 %v1208, %v1208
    %v1301 = vmul.f32 %v1211, %v1211
    %v1302 = vmul.f32 %v1216, %v1216
    %v1303 = vmul.f32 %v1219, %v1219
    %v1304 = vmul.f32 %v1224, %v1224
    %v1305 = vmul.f32 %v1227, %v1227
    %v1306 = vmul.f32 %v1232, %v1232
    %v1307 = vmul.f32 %v1235, %v1235
    %v1308 = vadd.f32 %v1276, %v1277
    %v1309 = vadd.f32 %v1308, %v1278
    %v1310 = vadd.f32 %v1309, %v1279
    %v1311 = vadd.f32 %v1310, %v1280
    %v1312 = vadd.f32 %v1311, %v1281
    %v1313 = vadd.f32 %v1312, %v1282
    %v1314 = vadd.f32 %v1313, %v1283
    %v1315 = vadd.f32 %v1314, %v1284
    %v1316 = vadd.f32 %v1315, %v1285
    %v1317 = vadd.f32 %v1316, %v1286
    %v1318 = vadd.f32 %v1317, %v1287
    %v1319 = vadd.f32 %v1318, %v1288
    %v1320 = vadd.f32 %v1319, %v1289
    %v1321 = vadd.f32 %v1320, %v1290
    %v1322 = vadd.f32 %v1321, %v1291
    %v1323 = vadd.f32 %v1322, %v1292
    %v1324 = vadd.f32 %v1323, %v1293
    %v1325 = vadd.f32 %v1324, %v1294
    %v1326 = vadd.f32 %v1325, %v1295
    %v1327 = vadd.f32 %v1326, %v1296
    %v1328 = vadd.f32 %v1327, %v1297
    %v1329 = vadd.f32 %v1328, %v1298
    %v1330 = vadd.f32 %v1329, %v1299
    %v1331 = vadd.f32 %v1330, %v1300
    %v1332 = vadd.f32 %v1331, %v1301
    %v1333 = vadd.f32 %v1332, %v1302
    %v1334 = vadd.f32 %v1333, %v1303
    %v1335 = vadd.f32 %v1334, %v1304
    %v1336 = vadd.f32 %v1335, %v1305
    %v1337 = vadd.f32 %v1336, %v1306
    %v1338 = vadd.f32 %v1337, %v1307
    %v1339 = vrot.slane %v1338, 4
    %v1340 = vadd.f32 %v1338, %v1339
    %v1341 = vrot.slane %v1340, 2
    %v1342 = vadd.f32 %v1340, %v1341
    %v1343 = vrot.slane %v1342, 1
    %v1344 = vadd.f32 %v1342, %v1343
    %v1345 = vmul.f32 %v1344, %v542
    %v1346 = vmul.f32 %v1275, %v1275
    %v1347 = vsub.f32 %v1345, %v1346
    %v1348 = vmax.f32 %v1347, 0.0
    %v1349 = vadd.f32 %v1348, 1e-05
    %v1350 = vrsqrt.pop %v1349
    %v1351 = vmul.f32 %v79, %v1350
    %v1352 = vmul.f32 %v1275, %v1351
    %v1353 = vsub.f32 %v80, %v1352
    %v1355 = vlaneseq
    %v1356 = vshrl.u32 %v1355, 7
    %v1357 = vsub.s32 0, %v1356
    %v1358 = vrot.slane %v1351, %v1357
    %v1360 = vmul.f32 %v1112, %v1358
    %v1361 = vmul.f32 %v1115, %v1358
    %v1362 = vmul.f32 %v1120, %v1358
    %v1363 = vmul.f32 %v1123, %v1358
    %v1364 = vmul.f32 %v1128, %v1358
    %v1365 = vmul.f32 %v1131, %v1358
    %v1366 = vmul.f32 %v1136, %v1358
    %v1367 = vmul.f32 %v1139, %v1358
    %v1368 = vmul.f32 %v1144, %v1358
    %v1369 = vmul.f32 %v1147, %v1358
    %v1370 = vmul.f32 %v1152, %v1358
    %v1371 = vmul.f32 %v1155, %v1358
    %v1372 = vmul.f32 %v1160, %v1358
    %v1373 = vmul.f32 %v1163, %v1358
    %v1374 = vmul.f32 %v1168, %v1358
    %v1375 = vmul.f32 %v1171, %v1358
    %v1376 = vmul.f32 %v1176, %v1358
    %v1377 = vmul.f32 %v1179, %v1358
    %v1378 = vmul.f32 %v1184, %v1358
    %v1379 = vmul.f32 %v1187, %v1358
    %v1380 = vmul.f32 %v1192, %v1358
    %v1381 = vmul.f32 %v1195, %v1358
    %v1382 = vmul.f32 %v1200, %v1358
    %v1383 = vmul.f32 %v1203, %v1358
    %v1384 = vmul.f32 %v1208, %v1358
    %v1385 = vmul.f32 %v1211, %v1358
    %v1386 = vmul.f32 %v1216, %v1358
    %v1387 = vmul.f32 %v1219, %v1358
    %v1388 = vmul.f32 %v1224, %v1358
    %v1389 = vmul.f32 %v1227, %v1358
    %v1390 = vmul.f32 %v1232, %v1358
    %v1391 = vmul.f32 %v1235, %v1358
    %v1393 = vlaneseq
    %v1394 = vshrl.u32 %v1393, 7
    %v1395 = vsub.s32 0, %v1394
    %v1396 = vrot.slane %v1353, %v1395
    %v1398 = vadd.f32 %v1360, %v1396
    %v1399 = vadd.f32 %v1361, %v1396
    %v1400 = vadd.f32 %v1362, %v1396
    %v1401 = vadd.f32 %v1363, %v1396
    %v1402 = vadd.f32 %v1364, %v1396
    %v1403 = vadd.f32 %v1365, %v1396
    %v1404 = vadd.f32 %v1366, %v1396
    %v1405 = vadd.f32 %v1367, %v1396
    %v1406 = vadd.f32 %v1368, %v1396
    %v1407 = vadd.f32 %v1369, %v1396
    %v1408 = vadd.f32 %v1370, %v1396
    %v1409 = vadd.f32 %v1371, %v1396
    %v1410 = vadd.f32 %v1372, %v1396
    %v1411 = vadd.f32 %v1373, %v1396
    %v1412 = vadd.f32 %v1374, %v1396
    %v1413 = vadd.f32 %v1375, %v1396
    %v1414 = vadd.f32 %v1376, %v1396
    %v1415 = vadd.f32 %v1377, %v1396
    %v1416 = vadd.f32 %v1378, %v1396
    %v1417 = vadd.f32 %v1379, %v1396
    %v1418 = vadd.f32 %v1380, %v1396
    %v1419 = vadd.f32 %v1381, %v1396
    %v1420 = vadd.f32 %v1382, %v1396
    %v1421 = vadd.f32 %v1383, %v1396
    %v1422 = vadd.f32 %v1384, %v1396
    %v1423 = vadd.f32 %v1385, %v1396
    %v1424 = vadd.f32 %v1386, %v1396
    %v1425 = vadd.f32 %v1387, %v1396
    %v1426 = vadd.f32 %v1388, %v1396
    %v1427 = vadd.f32 %v1389, %v1396
    %v1428 = vadd.f32 %v1390, %v1396
    %v1429 = vadd.f32 %v1391, %v1396
    %v1430 = vmax.f32 %v1398, 0.0
    %v1431 = vmax.f32 %v1399, 0.0
    %v1432 = vmax.f32 %v1400, 0.0
    %v1433 = vmax.f32 %v1401, 0.0
    %v1434 = vmax.f32 %v1402, 0.0
    %v1435 = vmax.f32 %v1403, 0.0
    %v1436 = vmax.f32 %v1404, 0.0
    %v1437 = vmax.f32 %v1405, 0.0
    %v1438 = vmax.f32 %v1406, 0.0
    %v1439 = vmax.f32 %v1407, 0.0
    %v1440 = vmax.f32 %v1408, 0.0
    %v1441 = vmax.f32 %v1409, 0.0
    %v1442 = vmax.f32 %v1410, 0.0
    %v1443 = vmax.f32 %v1411, 0.0
    %v1444 = vmax.f32 %v1412, 0.0
    %v1445 = vmax.f32 %v1413, 0.0
    %v1446 = vmax.f32 %v1414, 0.0
    %v1447 = vmax.f32 %v1415, 0.0
    %v1448 = vmax.f32 %v1416, 0.0
    %v1449 = vmax.f32 %v1417, 0.0
    %v1450 = vmax.f32 %v1418, 0.0
    %v1451 = vmax.f32 %v1419, 0.0
    %v1452 = vmax.f32 %v1420, 0.0
    %v1453 = vmax.f32 %v1421, 0.0
    %v1454 = vmax.f32 %v1422, 0.0
    %v1455 = vmax.f32 %v1423, 0.0
    %v1456 = vmax.f32 %v1424, 0.0
    %v1457 = vmax.f32 %v1425, 0.0
    %v1458 = vmax.f32 %v1426, 0.0
    %v1459 = vmax.f32 %v1427, 0.0
    %v1460 = vmax.f32 %v1428, 0.0
    %v1461 = vmax.f32 %v1429, 0.0
    %v1462 = vpack.c.bf16 %v1431, %v1430
    %v1463 = vpack.c.bf16 %v1433, %v1432
    %v1464 = vpack.c.bf16 %v1435, %v1434
    %v1465 = vpack.c.bf16 %v1437, %v1436
    %v1466 = vpack.c.bf16 %v1439, %v1438
    %v1467 = vpack.c.bf16 %v1441, %v1440
    %v1468 = vpack.c.bf16 %v1443, %v1442
    %v1469 = vpack.c.bf16 %v1445, %v1444
    %v1470 = vpack.c.bf16 %v1447, %v1446
    %v1471 = vpack.c.bf16 %v1449, %v1448
    %v1472 = vpack.c.bf16 %v1451, %v1450
    %v1473 = vpack.c.bf16 %v1453, %v1452
    %v1474 = vpack.c.bf16 %v1455, %v1454
    %v1475 = vpack.c.bf16 %v1457, %v1456
    %v1476 = vpack.c.bf16 %v1459, %v1458
    %v1477 = vpack.c.bf16 %v1461, %v1460
    %v1479 = vlaneseq
    %v1480 = vshrl.u32 %v1479, 7
    %v1481 = vsub.s32 0, %v1480
    %v1482 = vrot.slane %v81, %v1481
    %v1500 = vunpack.c.l.b16 %v115
    %v1501 = vunpack.c.l.b16 %v116
    %v1502 = vunpack.c.l.b16 %v117
    %v1503 = vunpack.c.l.b16 %v118
    %v1504 = vunpack.c.l.b16 %v119
    %v1505 = vunpack.c.l.b16 %v120
    %v1506 = vunpack.c.l.b16 %v121
    %v1507 = vunpack.c.l.b16 %v122
    %v1508 = vunpack.c.l.b16 %v123
    %v1509 = vunpack.c.l.b16 %v124
    %v1510 = vunpack.c.l.b16 %v125
    %v1511 = vunpack.c.l.b16 %v126
    %v1512 = vunpack.c.l.b16 %v127
    %v1513 = vunpack.c.l.b16 %v128
    %v1514 = vunpack.c.l.b16 %v129
    %v1515 = vunpack.c.l.b16 %v130
    %v1516 = vpack.c.b16 %v1501, %v1500
    %v1517 = vpack.c.b16 %v1503, %v1502
    %v1518 = vpack.c.b16 %v1505, %v1504
    %v1519 = vpack.c.b16 %v1507, %v1506
    %v1520 = vpack.c.b16 %v1509, %v1508
    %v1521 = vpack.c.b16 %v1511, %v1510
    %v1522 = vpack.c.b16 %v1513, %v1512
    %v1523 = vpack.c.b16 %v1515, %v1514
    %1532 = vmatprep.subr.bf16.mxu0 0
    %1533 = vmatpush1.bf16.msra.mxu0 %v1516
    %1534 = vmatprep.subr.bf16.mxu0 0
    %1535 = vmatpush1.bf16.msra.mxu0 %v1517
    %1536 = vmatprep.subr.bf16.mxu0 0
    %1537 = vmatpush1.bf16.msra.mxu0 %v1518
    %1538 = vmatprep.subr.bf16.mxu0 0
    %1539 = vmatpush1.bf16.msra.mxu0 %v1519
    %1540 = vmatprep.subr.bf16.mxu0 0
    %1541 = vmatpush1.bf16.msra.mxu0 %v1520
    %1542 = vmatprep.subr.bf16.mxu0 0
    %1543 = vmatpush1.bf16.msra.mxu0 %v1521
    %1544 = vmatprep.subr.bf16.mxu0 0
    %1545 = vmatpush1.bf16.msra.mxu0 %v1522
    %1546 = vmatprep.subr.bf16.mxu0 0
    %1547 = vmatpush1.bf16.msra.mxu0 %v1523
    %1548 = vmatprep.subr.bf16.mxu0 0
    %1549 = vmatpush1.bf16.msra.mxu0 0
    %1550 = vmatprep.subr.bf16.mxu0 0
    %1551 = vmatpush1.bf16.msra.mxu0 0
    %1552 = vmatprep.subr.bf16.mxu0 0
    %1553 = vmatpush1.bf16.msra.mxu0 0
    %1554 = vmatprep.subr.bf16.mxu0 0
    %1555 = vmatpush1.bf16.msra.mxu0 0
    %1556 = vmatprep.subr.bf16.mxu0 0
    %1557 = vmatpush1.bf16.msra.mxu0 0
    %1558 = vmatprep.subr.bf16.mxu0 0
    %1559 = vmatpush1.bf16.msra.mxu0 0
    %1560 = vmatprep.subr.bf16.mxu0 0
    %1561 = vmatpush1.bf16.msra.mxu0 0
    %1562 = vmatprep.subr.bf16.mxu0 0
    %1563 = vmatpush1.bf16.msra.mxu0 0
    %1564 = vmatprep.mubr.bf16.mxu0 0
    %1565 = vmatmul.mubr.bf16.gmra.mrb[0].mxu0 %v1462
    %v1566 = vpop.f32.mrb[0].mxu0
    %v1567 = vadd.f32 %v1482, %v1566
    %v1568 = vpop.f32.mrb[0].mxu0
    %v1569 = vpop.f32.mrb[0].mxu0
    %v1570 = vadd.f32 %v1482, %v1569
    %v1571 = vpop.f32.mrb[0].mxu0
    %1572 = vmatprep.mubr.bf16.mxu0 0
    %1573 = vmatmul.mubr.bf16.gmra.mrb[0].mxu0 %v1463
    %v1574 = vpop.f32.mrb[0].mxu0
    %v1575 = vadd.f32 %v1482, %v1574
    %v1576 = vpop.f32.mrb[0].mxu0
    %v1577 = vpop.f32.mrb[0].mxu0
    %v1578 = vadd.f32 %v1482, %v1577
    %v1579 = vpop.f32.mrb[0].mxu0
    %1580 = vmatprep.mubr.bf16.mxu0 0
    %1581 = vmatmul.mubr.bf16.gmra.mrb[0].mxu0 %v1464
    %v1582 = vpop.f32.mrb[0].mxu0
    %v1583 = vadd.f32 %v1482, %v1582
    %v1584 = vpop.f32.mrb[0].mxu0
    %v1585 = vpop.f32.mrb[0].mxu0
    %v1586 = vadd.f32 %v1482, %v1585
    %v1587 = vpop.f32.mrb[0].mxu0
    %1588 = vmatprep.mubr.bf16.mxu0 0
    %1589 = vmatmul.mubr.bf16.gmra.mrb[0].mxu0 %v1465
    %v1590 = vpop.f32.mrb[0].mxu0
    %v1591 = vadd.f32 %v1482, %v1590
    %v1592 = vpop.f32.mrb[0].mxu0
    %v1593 = vpop.f32.mrb[0].mxu0
    %v1594 = vadd.f32 %v1482, %v1593
    %v1595 = vpop.f32.mrb[0].mxu0
    %1596 = vmatprep.mubr.bf16.mxu0 0
    %1597 = vmatmul.mubr.bf16.gmra.mrb[0].mxu0 %v1466
    %v1598 = vpop.f32.mrb[0].mxu0
    %v1599 = vadd.f32 %v1482, %v1598
    %v1600 = vpop.f32.mrb[0].mxu0
    %v1601 = vpop.f32.mrb[0].mxu0
    %v1602 = vadd.f32 %v1482, %v1601
    %v1603 = vpop.f32.mrb[0].mxu0
    %1604 = vmatprep.mubr.bf16.mxu0 0
    %1605 = vmatmul.mubr.bf16.gmra.mrb[0].mxu0 %v1467
    %v1606 = vpop.f32.mrb[0].mxu0
    %v1607 = vadd.f32 %v1482, %v1606
    %v1608 = vpop.f32.mrb[0].mxu0
    %v1609 = vpop.f32.mrb[0].mxu0
    %v1610 = vadd.f32 %v1482, %v1609
    %v1611 = vpop.f32.mrb[0].mxu0
    %1612 = vmatprep.mubr.bf16.mxu0 0
    %1613 = vmatmul.mubr.bf16.gmra.mrb[0].mxu0 %v1468
    %v1614 = vpop.f32.mrb[0].mxu0
    %v1615 = vadd.f32 %v1482, %v1614
    %v1616 = vpop.f32.mrb[0].mxu0
    %v1617 = vpop.f32.mrb[0].mxu0
    %v1618 = vadd.f32 %v1482, %v1617
    %v1619 = vpop.f32.mrb[0].mxu0
    %1620 = vmatprep.mubr.bf16.mxu0 0
    %1621 = vmatmul.mubr.bf16.gmra.mrb[0].mxu0 %v1469
    %v1622 = vpop.f32.mrb[0].mxu0
    %v1623 = vadd.f32 %v1482, %v1622
    %v1624 = vpop.f32.mrb[0].mxu0
    %v1625 = vpop.f32.mrb[0].mxu0
    %v1626 = vadd.f32 %v1482, %v1625
    %v1627 = vpop.f32.mrb[0].mxu0
    %1628 = vmatprep.mubr.bf16.mxu0 0
    %1629 = vmatmul.mubr.bf16.gmra.mrb[0].mxu0 %v1470
    %v1630 = vpop.f32.mrb[0].mxu0
    %v1631 = vadd.f32 %v1482, %v1630
    %v1632 = vpop.f32.mrb[0].mxu0
    %v1633 = vpop.f32.mrb[0].mxu0
    %v1634 = vadd.f32 %v1482, %v1633
    %v1635 = vpop.f32.mrb[0].mxu0
    %1636 = vmatprep.mubr.bf16.mxu0 0
    %1637 = vmatmul.mubr.bf16.gmra.mrb[0].mxu0 %v1471
    %v1638 = vpop.f32.mrb[0].mxu0
    %v1639 = vadd.f32 %v1482, %v1638
    %v1640 = vpop.f32.mrb[0].mxu0
    %v1641 = vpop.f32.mrb[0].mxu0
    %v1642 = vadd.f32 %v1482, %v1641
    %v1643 = vpop.f32.mrb[0].mxu0
    %1644 = vmatprep.mubr.bf16.mxu0 0
    %1645 = vmatmul.mubr.bf16.gmra.mrb[0].mxu0 %v1472
    %v1646 = vpop.f32.mrb[0].mxu0
    %v1647 = vadd.f32 %v1482, %v1646
    %v1648 = vpop.f32.mrb[0].mxu0
    %v1649 = vpop.f32.mrb[0].mxu0
    %v1650 = vadd.f32 %v1482, %v1649
    %v1651 = vpop.f32.mrb[0].mxu0
    %1652 = vmatprep.mubr.bf16.mxu0 0
    %1653 = vmatmul.mubr.bf16.gmra.mrb[0].mxu0 %v1473
    %v1654 = vpop.f32.mrb[0].mxu0
    %v1655 = vadd.f32 %v1482, %v1654
    %v1656 = vpop.f32.mrb[0].mxu0
    %v1657 = vpop.f32.mrb[0].mxu0
    %v1658 = vadd.f32 %v1482, %v1657
    %v1659 = vpop.f32.mrb[0].mxu0
    %1660 = vmatprep.mubr.bf16.mxu0 0
    %1661 = vmatmul.mubr.bf16.gmra.mrb[0].mxu0 %v1474
    %v1662 = vpop.f32.mrb[0].mxu0
    %v1663 = vadd.f32 %v1482, %v1662
    %v1664 = vpop.f32.mrb[0].mxu0
    %v1665 = vpop.f32.mrb[0].mxu0
    %v1666 = vadd.f32 %v1482, %v1665
    %v1667 = vpop.f32.mrb[0].mxu0
    %1668 = vmatprep.mubr.bf16.mxu0 0
    %1669 = vmatmul.mubr.bf16.gmra.mrb[0].mxu0 %v1475
    %v1670 = vpop.f32.mrb[0].mxu0
    %v1671 = vadd.f32 %v1482, %v1670
    %v1672 = vpop.f32.mrb[0].mxu0
    %v1673 = vpop.f32.mrb[0].mxu0
    %v1674 = vadd.f32 %v1482, %v1673
    %v1675 = vpop.f32.mrb[0].mxu0
    %1676 = vmatprep.mubr.bf16.mxu0 0
    %1677 = vmatmul.mubr.bf16.gmra.mrb[0].mxu0 %v1476
    %v1678 = vpop.f32.mrb[0].mxu0
    %v1679 = vadd.f32 %v1482, %v1678
    %v1680 = vpop.f32.mrb[0].mxu0
    %v1681 = vpop.f32.mrb[0].mxu0
    %v1682 = vadd.f32 %v1482, %v1681
    %v1683 = vpop.f32.mrb[0].mxu0
    %1684 = vmatprep.mubr.bf16.mxu0 0
    %1685 = vmatmul.mubr.bf16.gmra.mrb[0].mxu0 %v1477
    %v1686 = vpop.f32.mrb[0].mxu0
    %v1687 = vadd.f32 %v1482, %v1686
    %v1688 = vpop.f32.mrb[0].mxu0
    %v1689 = vpop.f32.mrb[0].mxu0
    %v1690 = vadd.f32 %v1482, %v1689
    %v1691 = vpop.f32.mrb[0].mxu0
    %1692 = vdwg.mxu0
    %v1693 = vld [vmem:[#allocation5] sm:$0xff]
    %v1694 = vld [vmem:[#allocation5 + $0x8] sm:$0xff]
    %v1695 = vld [vmem:[#allocation5 + $0x10] sm:$0xff]
    %v1696 = vld [vmem:[#allocation5 + $0x18] sm:$0xff]
    %v1697 = vld [vmem:[#allocation5 + $0x20] sm:$0xff]
    %v1698 = vld [vmem:[#allocation5 + $0x28] sm:$0xff]
    %v1699 = vld [vmem:[#allocation5 + $0x30] sm:$0xff]
    %v1700 = vld [vmem:[#allocation5 + $0x38] sm:$0xff]
    %v1701 = vld [vmem:[#allocation5 + $0x40] sm:$0xff]
    %v1702 = vld [vmem:[#allocation5 + $0x48] sm:$0xff]
    %v1703 = vld [vmem:[#allocation5 + $0x50] sm:$0xff]
    %v1704 = vld [vmem:[#allocation5 + $0x58] sm:$0xff]
    %v1705 = vld [vmem:[#allocation5 + $0x60] sm:$0xff]
    %v1706 = vld [vmem:[#allocation5 + $0x68] sm:$0xff]
    %v1707 = vld [vmem:[#allocation5 + $0x70] sm:$0xff]
    %v1708 = vld [vmem:[#allocation5 + $0x78] sm:$0xff]
    %v1709 = vld [vmem:[#allocation5 + $0x80] sm:$0xff]
    %v1710 = vld [vmem:[#allocation5 + $0x88] sm:$0xff]
    %v1711 = vld [vmem:[#allocation5 + $0x90] sm:$0xff]
    %v1712 = vld [vmem:[#allocation5 + $0x98] sm:$0xff]
    %v1713 = vld [vmem:[#allocation5 + $0xa0] sm:$0xff]
    %v1714 = vld [vmem:[#allocation5 + $0xa8] sm:$0xff]
    %v1715 = vld [vmem:[#allocation5 + $0xb0] sm:$0xff]
    %v1716 = vld [vmem:[#allocation5 + $0xb8] sm:$0xff]
    %v1717 = vld [vmem:[#allocation5 + $0xc0] sm:$0xff]
    %v1718 = vld [vmem:[#allocation5 + $0xc8] sm:$0xff]
    %v1719 = vld [vmem:[#allocation5 + $0xd0] sm:$0xff]
    %v1720 = vld [vmem:[#allocation5 + $0xd8] sm:$0xff]
    %v1721 = vld [vmem:[#allocation5 + $0xe0] sm:$0xff]
    %v1722 = vld [vmem:[#allocation5 + $0xe8] sm:$0xff]
    %v1723 = vld [vmem:[#allocation5 + $0xf0] sm:$0xff]
    %v1724 = vld [vmem:[#allocation5 + $0xf8] sm:$0xff]
    %v1726 = vlaneseq
    %v1727 = vshrl.u32 %v1726, 7
    %v1728 = vsub.s32 0, %v1727
    %v1729 = vrot.slane %v82, %v1728
    %v1731 = vmul.f32 %v1729, %v1693
    %v1732 = vmul.f32 %v1729, %v1694
    %v1733 = vmul.f32 %v1729, %v1695
    %v1734 = vmul.f32 %v1729, %v1696
    %v1735 = vmul.f32 %v1729, %v1697
    %v1736 = vmul.f32 %v1729, %v1698
    %v1737 = vmul.f32 %v1729, %v1699
    %v1738 = vmul.f32 %v1729, %v1700
    %v1739 = vmul.f32 %v1729, %v1701
    %v1740 = vmul.f32 %v1729, %v1702
    %v1741 = vmul.f32 %v1729, %v1703
    %v1742 = vmul.f32 %v1729, %v1704
    %v1743 = vmul.f32 %v1729, %v1705
    %v1744 = vmul.f32 %v1729, %v1706
    %v1745 = vmul.f32 %v1729, %v1707
    %v1746 = vmul.f32 %v1729, %v1708
    %v1747 = vmul.f32 %v1729, %v1709
    %v1748 = vmul.f32 %v1729, %v1710
    %v1749 = vmul.f32 %v1729, %v1711
    %v1750 = vmul.f32 %v1729, %v1712
    %v1751 = vmul.f32 %v1729, %v1713
    %v1752 = vmul.f32 %v1729, %v1714
    %v1753 = vmul.f32 %v1729, %v1715
    %v1754 = vmul.f32 %v1729, %v1716
    %v1755 = vmul.f32 %v1729, %v1717
    %v1756 = vmul.f32 %v1729, %v1718
    %v1757 = vmul.f32 %v1729, %v1719
    %v1758 = vmul.f32 %v1729, %v1720
    %v1759 = vmul.f32 %v1729, %v1721
    %v1760 = vmul.f32 %v1729, %v1722
    %v1761 = vmul.f32 %v1729, %v1723
    %v1762 = vmul.f32 %v1729, %v1724
    %v1763 = vadd.f32 %v1567, %v1731
    %v1764 = vadd.f32 %v1570, %v1732
    %v1765 = vadd.f32 %v1575, %v1733
    %v1766 = vadd.f32 %v1578, %v1734
    %v1767 = vadd.f32 %v1583, %v1735
    %v1768 = vadd.f32 %v1586, %v1736
    %v1769 = vadd.f32 %v1591, %v1737
    %v1770 = vadd.f32 %v1594, %v1738
    %v1771 = vadd.f32 %v1599, %v1739
    %v1772 = vadd.f32 %v1602, %v1740
    %v1773 = vadd.f32 %v1607, %v1741
    %v1774 = vadd.f32 %v1610, %v1742
    %v1775 = vadd.f32 %v1615, %v1743
    %v1776 = vadd.f32 %v1618, %v1744
    %v1777 = vadd.f32 %v1623, %v1745
    %v1778 = vadd.f32 %v1626, %v1746
    %v1779 = vadd.f32 %v1631, %v1747
    %v1780 = vadd.f32 %v1634, %v1748
    %v1781 = vadd.f32 %v1639, %v1749
    %v1782 = vadd.f32 %v1642, %v1750
    %v1783 = vadd.f32 %v1647, %v1751
    %v1784 = vadd.f32 %v1650, %v1752
    %v1785 = vadd.f32 %v1655, %v1753
    %v1786 = vadd.f32 %v1658, %v1754
    %v1787 = vadd.f32 %v1663, %v1755
    %v1788 = vadd.f32 %v1666, %v1756
    %v1789 = vadd.f32 %v1671, %v1757
    %v1790 = vadd.f32 %v1674, %v1758
    %v1791 = vadd.f32 %v1679, %v1759
    %v1792 = vadd.f32 %v1682, %v1760
    %v1793 = vadd.f32 %v1687, %v1761
    %v1794 = vadd.f32 %v1690, %v1762
    %v1795 = vmax.f32 %v1763, 0.0
    %v1796 = vmax.f32 %v1764, 0.0
    %v1797 = vmax.f32 %v1765, 0.0
    %v1798 = vmax.f32 %v1766, 0.0
    %v1799 = vmax.f32 %v1767, 0.0
    %v1800 = vmax.f32 %v1768, 0.0
    %v1801 = vmax.f32 %v1769, 0.0
    %v1802 = vmax.f32 %v1770, 0.0
    %v1803 = vmax.f32 %v1771, 0.0
    %v1804 = vmax.f32 %v1772, 0.0
    %v1805 = vmax.f32 %v1773, 0.0
    %v1806 = vmax.f32 %v1774, 0.0
    %v1807 = vmax.f32 %v1775, 0.0
    %v1808 = vmax.f32 %v1776, 0.0
    %v1809 = vmax.f32 %v1777, 0.0
    %v1810 = vmax.f32 %v1778, 0.0
    %v1811 = vmax.f32 %v1779, 0.0
    %v1812 = vmax.f32 %v1780, 0.0
    %v1813 = vmax.f32 %v1781, 0.0
    %v1814 = vmax.f32 %v1782, 0.0
    %v1815 = vmax.f32 %v1783, 0.0
    %v1816 = vmax.f32 %v1784, 0.0
    %v1817 = vmax.f32 %v1785, 0.0
    %v1818 = vmax.f32 %v1786, 0.0
    %v1819 = vmax.f32 %v1787, 0.0
    %v1820 = vmax.f32 %v1788, 0.0
    %v1821 = vmax.f32 %v1789, 0.0
    %v1822 = vmax.f32 %v1790, 0.0
    %v1823 = vmax.f32 %v1791, 0.0
    %v1824 = vmax.f32 %v1792, 0.0
    %v1825 = vmax.f32 %v1793, 0.0
    %v1826 = vmax.f32 %v1794, 0.0
    %1827 = vst [vmem:[#allocation10] sm:$0xff] %v1795
    %1828 = vst [vmem:[#allocation10 + $0x8] sm:$0xff] %v1796
    %1829 = vst [vmem:[#allocation10 + $0x10] sm:$0xff] %v1797
    %1830 = vst [vmem:[#allocation10 + $0x18] sm:$0xff] %v1798
    %1831 = vst [vmem:[#allocation10 + $0x20] sm:$0xff] %v1799
    %1832 = vst [vmem:[#allocation10 + $0x28] sm:$0xff] %v1800
    %1833 = vst [vmem:[#allocation10 + $0x30] sm:$0xff] %v1801
    %1834 = vst [vmem:[#allocation10 + $0x38] sm:$0xff] %v1802
    %1835 = vst [vmem:[#allocation10 + $0x40] sm:$0xff] %v1803
    %1836 = vst [vmem:[#allocation10 + $0x48] sm:$0xff] %v1804
    %1837 = vst [vmem:[#allocation10 + $0x50] sm:$0xff] %v1805
    %1838 = vst [vmem:[#allocation10 + $0x58] sm:$0xff] %v1806
    %1839 = vst [vmem:[#allocation10 + $0x60] sm:$0xff] %v1807
    %1840 = vst [vmem:[#allocation10 + $0x68] sm:$0xff] %v1808
    %1841 = vst [vmem:[#allocation10 + $0x70] sm:$0xff] %v1809
    %1842 = vst [vmem:[#allocation10 + $0x78] sm:$0xff] %v1810
    %1843 = vst [vmem:[#allocation10 + $0x80] sm:$0xff] %v1811
    %1844 = vst [vmem:[#allocation10 + $0x88] sm:$0xff] %v1812
    %1845 = vst [vmem:[#allocation10 + $0x90] sm:$0xff] %v1813
    %1846 = vst [vmem:[#allocation10 + $0x98] sm:$0xff] %v1814
    %1847 = vst [vmem:[#allocation10 + $0xa0] sm:$0xff] %v1815
    %1848 = vst [vmem:[#allocation10 + $0xa8] sm:$0xff] %v1816
    %1849 = vst [vmem:[#allocation10 + $0xb0] sm:$0xff] %v1817
    %1850 = vst [vmem:[#allocation10 + $0xb8] sm:$0xff] %v1818
    %1851 = vst [vmem:[#allocation10 + $0xc0] sm:$0xff] %v1819
    %1852 = vst [vmem:[#allocation10 + $0xc8] sm:$0xff] %v1820
    %1853 = vst [vmem:[#allocation10 + $0xd0] sm:$0xff] %v1821
    %1854 = vst [vmem:[#allocation10 + $0xd8] sm:$0xff] %v1822
    %1855 = vst [vmem:[#allocation10 + $0xe0] sm:$0xff] %v1823
    %1856 = vst [vmem:[#allocation10 + $0xe8] sm:$0xff] %v1824
    %1857 = vst [vmem:[#allocation10 + $0xf0] sm:$0xff] %v1825
    %1858 = vst [vmem:[#allocation10 + $0xf8] sm:$0xff] %v1826
    // Predicated region
    $region38: #{tpu_custom_call.1} parent=1 // pred_check
      _
    $region39: #{tpu_custom_call.1} parent=1 // pred_check_branch
      %1860 = sbr.rel (0) target = $region41
    $region40: #{tpu_custom_call.1} parent=1 // pred_region
      %s1862 = ssub.s32 4096, 4096
      %1863 = vsyncadd [#allocation4], %s1862
      %s1864 = sshll.u32 [#allocation10], 4
      %s1865 = int_to_ptr.vmem [resolvable:$true] %s1864
      %1870 = dma.vmem_to_hbm [thread:$0]  %s1865, 4096, %s5, [#allocation4], 128, 128, 8
    $region41: #{tpu_custom_call.1} parent=1 // pred_fallthru
      _
    // Predicated region
    $region42: #{tpu_custom_call.1} parent=1 // pred_check
      _
    $region43: #{tpu_custom_call.1} parent=1 // pred_check_branch
      %1872 = sbr.rel (0) target = $region45
    $region44: #{tpu_custom_call.1} parent=1 // pred_region
      %1873 = dma.done [#allocation4], 4096
    $region45: #{tpu_custom_call.1} parent=1 // pred_fallthru
      _
    %1874 = vsyncpa [#allocation3], 1
    %1875 = vsyncpa [#allocation6], 1
    %1876 = vsyncpa [#allocation9], 1
    %1877 = vsyncpa [#allocation4], 1

</llo_original>
